<compile_context>
chip_gen: v5e
topology: v5e:2x2
jax: 0.10.0
libtpu: 0.0.40
codegen_flags: <defaults>
</compile_context>

<pallas_src>
import math
from functools import partial

import jax
import jax.numpy as jnp
from jax.experimental import pallas as pl
from jax.experimental.pallas import tpu as pltpu

PAD_ID = 0
LN_EPS = 1e-5


def _vmem_limit_bytes():
    # ~48 MiB on v7x (64 MiB physical / TC), ~112 MiB on v5e/v6e (128 MiB).
    try:
        cap = pltpu.get_tpu_info().vmem_capacity_bytes
    except Exception:
        cap = 64 * 1024 * 1024
    return int(max(32 * 1024 * 1024,
                   min(cap - 16 * 1024 * 1024, 112 * 1024 * 1024)))


def _pick_row_chunk(rows, target=512):
    if rows <= target:
        return rows
    for c in range(target, 0, -1):
        if rows % c == 0:
            return c
    return rows


# ----------------------------------------------------------------------------
# Pallas kernel: all encoder blocks for one batch tile (grid = (B//bt, L)).
# ----------------------------------------------------------------------------
def encoder_stack_kernel(x_ref, bias_ref,
                         wqkv_ref, bqkv_ref, wz_ref, bz_ref,
                         g1_ref, be1_ref, w1_ref, b1_ref,
                         w2_ref, b2_ref, g2_ref, be2_ref,
                         o_ref,
                         x_vmem, qkv_vmem,
                         *, bt, seq, head, q_k_size, v_size, ffn_chunk):
    layer = pl.program_id(1)
    n_layers = pl.num_programs(1)
    emb = x_ref.shape[-1]
    rows = bt * seq
    hdq = head * q_k_size
    inv_e = 1.0 / emb

    # First layer for this batch tile: load the (bt, S, E) bf16 input slab and
    # widen into the resident f32 activation buffer (bt*S, E).
    @pl.when(layer == 0)
    def _():
        x_vmem[...] = x_ref[...].reshape(rows, emb).astype(jnp.float32)

    x = x_vmem[...]                              # (rows, E) f32 residual
    xb = x.astype(jnp.bfloat16)

    # --- fused Q/K/V projection: one lane-dense MXU matmul per layer ----------
    qkv_vmem[...] = (jnp.dot(xb, wqkv_ref[0],
                             preferred_element_type=jnp.float32)
                     + bqkv_ref[0]).astype(jnp.bfloat16)

    bias = bias_ref[...]                         # (bt, 1, S): -1e9 on PAD keys

    # --- per-head attention, batched over the bt batch elements ---------------
    z_parts = []
    for h in range(head):                        # head is small; static loop
        cq = h * q_k_size
        ck = hdq + h * q_k_size
        cv = 2 * hdq + h * v_size
        q = qkv_vmem[:, cq:cq + q_k_size].reshape(bt, seq, q_k_size)
        k = qkv_vmem[:, ck:ck + q_k_size].reshape(bt, seq, q_k_size)
        v = qkv_vmem[:, cv:cv + v_size].reshape(bt, seq, v_size)

        s = jnp.einsum('bqd,bkd->bqk', q, k,
                       preferred_element_type=jnp.float32)   # scale folded in Wq
        s = s + bias                                          # additive PAD mask
        s = s - jnp.max(s, axis=-1, keepdims=True)
        p = jnp.exp(s)
        p = p * pl.reciprocal(jnp.sum(p, axis=-1, keepdims=True), approx=True)
        zh = jnp.einsum('bqk,bkd->bqd', p.astype(jnp.bfloat16), v,
                        preferred_element_type=jnp.float32)   # (bt, S, Dv)
        z_parts.append(zh.reshape(rows, v_size).astype(jnp.bfloat16))

    # --- single output projection over all heads (K = H*Dv) -------------------
    z_cat = jnp.concatenate(z_parts, axis=-1)                 # (rows, H*Dv) bf16
    z = jnp.dot(z_cat, wz_ref[0],
                preferred_element_type=jnp.float32) + bz_ref[0]

    # --- add & norm 1 (one-pass stats) ----------------------------------------
    r1 = z + x
    mu1 = jnp.sum(r1, axis=-1, keepdims=True) * inv_e
    var1 = jnp.maximum(jnp.sum(r1 * r1, axis=-1, keepdims=True) * inv_e
                       - mu1 * mu1, 0.0)
    n1 = (r1 - mu1) * jax.lax.rsqrt(var1 + LN_EPS) * g1_ref[0] + be1_ref[0]
    x_vmem[...] = n1                             # new residual base

    # --- FFN + add & norm 2, row-chunked (bounds the (chunk, F) live slab) ----
    b1 = b1_ref[0]
    b2 = b2_ref[0]
    g2 = g2_ref[0]
    be2 = be2_ref[0]
    n_chunks = rows // ffn_chunk

    def ffn_chunk_body(r0):
        n1c = x_vmem[pl.ds(r0, ffn_chunk), :]
        h1 = jnp.dot(n1c.astype(jnp.bfloat16), w1_ref[0],
                     preferred_element_type=jnp.float32) + b1
        h1 = jnp.maximum(h1, 0.0)                # ReLU
        ff = jnp.dot(h1.astype(jnp.bfloat16), w2_ref[0],
                     preferred_element_type=jnp.float32) + b2
        r2 = ff + n1c
        mu2 = jnp.sum(r2, axis=-1, keepdims=True) * inv_e
        var2 = jnp.maximum(jnp.sum(r2 * r2, axis=-1, keepdims=True) * inv_e
                           - mu2 * mu2, 0.0)
        x_vmem[pl.ds(r0, ffn_chunk), :] = (
            (r2 - mu2) * jax.lax.rsqrt(var2 + LN_EPS) * g2 + be2)

    if n_chunks == 1:
        ffn_chunk_body(0)
    else:
        def loop_body(c, carry):
            ffn_chunk_body(pl.multiple_of(c * ffn_chunk, ffn_chunk))
            return carry
        jax.lax.fori_loop(0, n_chunks, loop_body, 0)

    @pl.when(layer == n_layers - 1)
    def _():
        o_ref[...] = x_vmem[...].reshape(bt, seq, emb)


def encoder_stack(x, pad_bias, weights, *, bt, head, q_k_size, v_size):
    B, S, E = x.shape
    L = weights[0].shape[0]
    rows = bt * S
    hdq = head * q_k_size
    hdv = head * v_size
    ffn_chunk = _pick_row_chunk(rows)

    def wspec(arr):
        nd = arr.ndim
        return pl.BlockSpec((1,) + arr.shape[1:],
                            lambda b, l, _nd=nd: (l,) + (0,) * (_nd - 1))

    in_specs = [pl.BlockSpec((bt, S, E), lambda b, l: (b, 0, 0)),   # x (bf16)
                pl.BlockSpec((bt, 1, S), lambda b, l: (b, 0, 0))]   # PAD bias
    in_specs += [wspec(w) for w in weights]

    kernel = partial(encoder_stack_kernel, bt=bt, seq=S, head=head,
                     q_k_size=q_k_size, v_size=v_size, ffn_chunk=ffn_chunk)

    return pl.pallas_call(
        kernel,
        out_shape=jax.ShapeDtypeStruct((B, S, E), jnp.float32),
        grid_spec=pltpu.PrefetchScalarGridSpec(
            num_scalar_prefetch=0,
            grid=(B // bt, L),               # layer axis last (resident acts)
            in_specs=in_specs,
            out_specs=pl.BlockSpec((bt, S, E), lambda b, l: (b, 0, 0)),
            scratch_shapes=[pltpu.VMEM((rows, E), jnp.float32),          # acts
                            pltpu.VMEM((rows, 2 * hdq + hdv), jnp.bfloat16)],
        ),
        compiler_params=pltpu.CompilerParams(
            dimension_semantics=("parallel", "arbitrary"),
            vmem_limit_bytes=_vmem_limit_bytes(),
        ),
    )(x, pad_bias, *weights)


# ----------------------------------------------------------------------------
# Glue: embedding + sinusoidal positional encoding (plain JAX)
# ----------------------------------------------------------------------------
def positional_encoding(seq_len, emb_size):
    pos = jnp.arange(seq_len, dtype=jnp.float32)[:, None]
    div = jnp.exp(-jnp.arange(0, emb_size, 2, dtype=jnp.float32)
                  * (math.log(10000.0) / emb_size))
    pe = jnp.zeros((seq_len, emb_size), jnp.float32)
    pe = pe.at[:, 0::2].set(jnp.sin(pos * div))
    pe = pe.at[:, 1::2].set(jnp.cos(pos * div))
    return pe


def init_params(key, vocab_size, emb_size, q_k_size, v_size, head, f_size, nblocks):
    keys = jax.random.split(key, 1 + nblocks)
    params = {"emb": jax.random.normal(keys[0], (vocab_size, emb_size),
                                       jnp.float32) * 0.1}

    def linear(k, fan_in, fan_out):
        kw, kb = jax.random.split(k)
        bound = 1.0 / math.sqrt(fan_in)
        w = jax.random.uniform(kw, (fan_in, fan_out), jnp.float32, -bound, bound)
        b = jax.random.uniform(kb, (1, fan_out), jnp.float32, -bound, bound)
        return w, b

    blocks = []
    for i in range(nblocks):
        ks = jax.random.split(keys[1 + i], 6)
        wq, bq = linear(ks[0], emb_size, head * q_k_size)
        wk, bk = linear(ks[1], emb_size, head * q_k_size)
        wv, bv = linear(ks[2], emb_size, head * v_size)
        wz, bz = linear(ks[3], head * v_size, emb_size)
        w1, b1 = linear(ks[4], emb_size, f_size)
        w2, b2 = linear(ks[5], f_size, emb_size)
        blocks.append(dict(
            wq=wq, bq=bq, wk=wk, bk=bk, wv=wv, bv=bv, wz=wz, bz=bz,
            g1=jnp.ones((1, emb_size), jnp.float32),
            be1=jnp.zeros((1, emb_size), jnp.float32),
            w1=w1, b1=b1, w2=w2, b2=b2,
            g2=jnp.ones((1, emb_size), jnp.float32),
            be2=jnp.zeros((1, emb_size), jnp.float32),
        ))
    params["blocks"] = blocks
    return params


def encoder_forward(tokens, params, *, head, q_k_size, v_size, batch_tile=None):
    B, S = tokens.shape
    E = params["emb"].shape[1]
    assert E % 2 == 0
    assert S % 8 == 0, "S should be a multiple of 8 (f32 sublane) for clean layout"
    # NOTE: for best MXU/lane utilization, E / H*Dk / H*Dv / F should be
    # multiples of 128 in real configs (toy config here is intentionally tiny).

    if batch_tile is None:
        bt = B // 2 if (B >= 2 and B % 2 == 0) else B   # >=2 grid steps (v7x)
    else:
        bt = batch_tile
    assert B % bt == 0

    # Additive key-PAD bias (B, 1, S): -1e9 where the KEY token is PAD.
    pad_bias = jnp.where(tokens == PAD_ID, -1e9, 0.0).astype(jnp.float32)[:, None, :]

    # Embedding + positional encoding (dropout = identity in eval mode);
    # DMA'd as bf16, widened to f32 inside the kernel at layer 0.
    x = (params["emb"][tokens] + positional_encoding(S, E)[None, :, :]
         ).astype(jnp.bfloat16)

    scale = 1.0 / math.sqrt(q_k_size)   # folded into Wq / bq (saves S*S scaling)

    def stack(name):
        return jnp.stack([blk[name] for blk in params["blocks"]], axis=0)

    wqkv = jnp.concatenate([stack("wq") * scale, stack("wk"), stack("wv")],
                           axis=-1).astype(jnp.bfloat16)   # (L, E, 2*H*Dk+H*Dv)
    bqkv = jnp.concatenate([stack("bq") * scale, stack("bk"), stack("bv")],
                           axis=-1)
    weights = [wqkv, bqkv,
               stack("wz").astype(jnp.bfloat16), stack("bz"),
               stack("g1"), stack("be1"),
               stack("w1").astype(jnp.bfloat16), stack("b1"),
               stack("w2").astype(jnp.bfloat16), stack("b2"),
               stack("g2"), stack("be2")]

    return encoder_stack(x, pad_bias, weights, bt=bt,
                         head=head, q_k_size=q_k_size, v_size=v_size)


if __name__ == "__main__":
    vocab_size, emb_size = 16, 32
    q_k_size, v_size, head = 16, 16, 2
    f_size, nblocks = 64, 2
    batch, seq = 2, 8

    key = jax.random.PRNGKey(0)
    kp, kt = jax.random.split(key)
    params = init_params(kp, vocab_size, emb_size, q_k_size, v_size,
                         head, f_size, nblocks)
    tokens = jax.random.randint(kt, (batch, seq), 0, vocab_size, dtype=jnp.int32)
    tokens = tokens.at[:, -2:].set(PAD_ID)   # make sure some PAD positions exist

    out = encoder_forward(tokens, params,
                          head=head, q_k_size=q_k_size, v_size=v_size)
    out = jax.block_until_ready(out)
    assert out.shape == (batch, seq, emb_size)
    assert bool(jnp.all(jnp.isfinite(out)))
    print("KERNEL_OK")
</pallas_src>

<mosaic_0001>
module attributes {stable_mosaic.version = 11 : i64} {
  func.func @encoder_stack_kernel(%arg0: i32, %arg1: i32, %arg2: memref<1x8x32xbf16, #tpu.memory_space<vmem>>, %arg3: memref<1x1x8xf32, #tpu.memory_space<vmem>>, %arg4: memref<1x32x96xbf16, #tpu.memory_space<vmem>>, %arg5: memref<1x1x96xf32, #tpu.memory_space<vmem>>, %arg6: memref<1x32x32xbf16, #tpu.memory_space<vmem>>, %arg7: memref<1x1x32xf32, #tpu.memory_space<vmem>>, %arg8: memref<1x1x32xf32, #tpu.memory_space<vmem>>, %arg9: memref<1x1x32xf32, #tpu.memory_space<vmem>>, %arg10: memref<1x32x64xbf16, #tpu.memory_space<vmem>>, %arg11: memref<1x1x64xf32, #tpu.memory_space<vmem>>, %arg12: memref<1x64x32xbf16, #tpu.memory_space<vmem>>, %arg13: memref<1x1x32xf32, #tpu.memory_space<vmem>>, %arg14: memref<1x1x32xf32, #tpu.memory_space<vmem>>, %arg15: memref<1x1x32xf32, #tpu.memory_space<vmem>>, %arg16: memref<1x8x32xf32, #tpu.memory_space<vmem>>, %arg17: memref<8x32xf32, #tpu.memory_space<vmem>>, %arg18: memref<8x96xbf16, #tpu.memory_space<vmem>>) attributes {dimension_semantics = [#tpu.dimension_semantics<parallel>, #tpu.dimension_semantics<arbitrary>], iteration_bounds = array<i64: 2, 2>, scalar_prefetch = 0 : i64, scratch_operands = 2 : i64, tpu.core_type = #tpu.core_type<tc>, window_params = [{transform_indices = @transform_0, window_bounds = array<i64: 1, 8, 32>}, {transform_indices = @transform_1, window_bounds = array<i64: 1, 1, 8>}, {transform_indices = @transform_2, window_bounds = array<i64: 1, 32, 96>}, {transform_indices = @transform_3, window_bounds = array<i64: 1, 1, 96>}, {transform_indices = @transform_4, window_bounds = array<i64: 1, 32, 32>}, {transform_indices = @transform_5, window_bounds = array<i64: 1, 1, 32>}, {transform_indices = @transform_6, window_bounds = array<i64: 1, 1, 32>}, {transform_indices = @transform_7, window_bounds = array<i64: 1, 1, 32>}, {transform_indices = @transform_8, window_bounds = array<i64: 1, 32, 64>}, {transform_indices = @transform_9, window_bounds = array<i64: 1, 1, 64>}, {transform_indices = @transform_10, window_bounds = array<i64: 1, 64, 32>}, {transform_indices = @transform_11, window_bounds = array<i64: 1, 1, 32>}, {transform_indices = @transform_12, window_bounds = array<i64: 1, 1, 32>}, {transform_indices = @transform_13, window_bounds = array<i64: 1, 1, 32>}, {transform_indices = @transform_14, window_bounds = array<i64: 1, 8, 32>}]} {
    %c0_i32 = arith.constant 0 : i32
    %0 = arith.cmpi eq, %arg1, %c0_i32 : i32
    %1 = arith.extui %0 : i1 to i32
    %c0_i32_0 = arith.constant 0 : i32
    %2 = arith.cmpi ne, %1, %c0_i32_0 : i32
    scf.if %2 {
      %c0_81 = arith.constant 0 : index
      %c0_82 = arith.constant 0 : index
      %c0_83 = arith.constant 0 : index
      %151 = vector.load %arg2[%c0_81, %c0_82, %c0_83] : memref<1x8x32xbf16, #tpu.memory_space<vmem>>, vector<1x8x32xbf16>
      %152 = vector.shape_cast %151 : vector<1x8x32xbf16> to vector<8x32xbf16>
      %153 = arith.extf %152 : vector<8x32xbf16> to vector<8x32xf32>
      %c0_84 = arith.constant 0 : index
      %c0_85 = arith.constant 0 : index
      %154 = vector.load %arg17[%c0_84, %c0_85] : memref<8x32xf32, #tpu.memory_space<vmem>>, vector<8x32xf32>
      tpu.vector_store %arg17[%c0_84, %c0_85], %153 {strides = array<i32>} : memref<8x32xf32, #tpu.memory_space<vmem>>, vector<8x32xf32>,
    } else {
    }
    %c0 = arith.constant 0 : index
    %c0_1 = arith.constant 0 : index
    %3 = vector.load %arg17[%c0, %c0_1] : memref<8x32xf32, #tpu.memory_space<vmem>>, vector<8x32xf32>
    %4 = arith.truncf %3 : vector<8x32xf32> to vector<8x32xbf16>
    %c0_2 = arith.constant 0 : index
    %c0_3 = arith.constant 0 : index
    %c0_4 = arith.constant 0 : index
    %5 = vector.load %arg4[%c0_2, %c0_3, %c0_4] : memref<1x32x96xbf16, #tpu.memory_space<vmem>>, vector<1x32x96xbf16>
    %6 = vector.shape_cast %5 : vector<1x32x96xbf16> to vector<32x96xbf16>
    %cst = arith.constant dense<0.000000e+00> : vector<8x96xf32>
    %7 = tpu.matmul %4, %6, %cst {dimension_numbers = #tpu.dot_dimension_numbers<[1], [0], [0], [1], [0, 0, 1, 1], [], []>} : vector<8x32xbf16>, vector<32x96xbf16>, vector<8x96xf32> -> vector<8x96xf32>
    %c0_5 = arith.constant 0 : index
    %c0_6 = arith.constant 0 : index
    %c0_7 = arith.constant 0 : index
    %8 = vector.load %arg5[%c0_5, %c0_6, %c0_7] : memref<1x1x96xf32, #tpu.memory_space<vmem>>, vector<1x1x96xf32>
    %9 = vector.shape_cast %8 : vector<1x1x96xf32> to vector<1x96xf32>
    %10 = vector.broadcast %9 : vector<1x96xf32> to vector<8x96xf32>
    %11 = arith.addf %7, %10 : vector<8x96xf32>
    %12 = arith.truncf %11 : vector<8x96xf32> to vector<8x96xbf16>
    %c0_8 = arith.constant 0 : index
    %c0_9 = arith.constant 0 : index
    %13 = vector.load %arg18[%c0_8, %c0_9] : memref<8x96xbf16, #tpu.memory_space<vmem>>, vector<8x96xbf16>
    tpu.vector_store %arg18[%c0_8, %c0_9], %12 {strides = array<i32>} : memref<8x96xbf16, #tpu.memory_space<vmem>>, vector<8x96xbf16>,
    %c0_10 = arith.constant 0 : index
    %c0_11 = arith.constant 0 : index
    %c0_12 = arith.constant 0 : index
    %14 = vector.load %arg3[%c0_10, %c0_11, %c0_12] : memref<1x1x8xf32, #tpu.memory_space<vmem>>, vector<1x1x8xf32>
    %c0_13 = arith.constant 0 : index
    %c0_14 = arith.constant 0 : index
    %15 = vector.load %arg18[%c0_13, %c0_14] : memref<8x96xbf16, #tpu.memory_space<vmem>>, vector<8x16xbf16>
    %16 = vector.shape_cast %15 : vector<8x16xbf16> to vector<1x8x16xbf16>
    %c0_15 = arith.constant 0 : index
    %c32 = arith.constant 32 : index
    %17 = vector.load %arg18[%c0_15, %c32] : memref<8x96xbf16, #tpu.memory_space<vmem>>, vector<8x16xbf16>
    %18 = vector.shape_cast %17 : vector<8x16xbf16> to vector<1x8x16xbf16>
    %c0_16 = arith.constant 0 : index
    %c64 = arith.constant 64 : index
    %19 = vector.load %arg18[%c0_16, %c64] : memref<8x96xbf16, #tpu.memory_space<vmem>>, vector<8x16xbf16>
    %20 = vector.shape_cast %19 : vector<8x16xbf16> to vector<1x8x16xbf16>
    "tpu.trace_start"() <{level = 10 : i32, message = "bqd,bkd->bqk"}> : () -> ()
    %cst_17 = arith.constant dense<0.000000e+00> : vector<1x8x8xf32>
    %21 = tpu.matmul %16, %18, %cst_17 {dimension_numbers = #tpu.dot_dimension_numbers<[2], [2], [1], [1], [0, 0, 0, 1, 1, 1], [0], [0]>} : vector<1x8x16xbf16>, vector<1x8x16xbf16>, vector<1x8x8xf32> -> vector<1x8x8xf32>
    "tpu.trace_stop"() : () -> ()
    %22 = vector.broadcast %14 : vector<1x1x8xf32> to vector<1x8x8xf32>
    %23 = arith.addf %21, %22 : vector<1x8x8xf32>
    %cst_18 = arith.constant dense<0xFF800000> : vector<1x8xf32>
    %24 = vector.multi_reduction <maximumf>, %23, %cst_18 [2] : vector<1x8x8xf32> to vector<1x8xf32>
    %25 = vector.shape_cast %24 : vector<1x8xf32> to vector<1x8x1xf32>
    %26 = vector.broadcast %25 : vector<1x8x1xf32> to vector<1x8x8xf32>
    %27 = arith.subf %23, %26 : vector<1x8x8xf32>
    %28 = math.exp %27 : vector<1x8x8xf32>
    %cst_19 = arith.constant dense<0.000000e+00> : vector<1x8xf32>
    %29 = vector.multi_reduction <add>, %28, %cst_19 [2] : vector<1x8x8xf32> to vector<1x8xf32>
    %30 = vector.shape_cast %29 : vector<1x8xf32> to vector<1x8x1xf32>
    %31 = tpu.reciprocal %30 {approx = true} : vector<1x8x1xf32> -> vector<1x8x1xf32>
    %32 = vector.broadcast %31 : vector<1x8x1xf32> to vector<1x8x8xf32>
    %33 = arith.mulf %28, %32 : vector<1x8x8xf32>
    %34 = arith.truncf %33 : vector<1x8x8xf32> to vector<1x8x8xbf16>
    "tpu.trace_start"() <{level = 10 : i32, message = "bqk,bkd->bqd"}> : () -> ()
    %cst_20 = arith.constant dense<0.000000e+00> : vector<1x8x16xf32>
    %35 = tpu.matmul %34, %20, %cst_20 {dimension_numbers = #tpu.dot_dimension_numbers<[2], [1], [1], [2], [0, 0, 0, 1, 1, 2], [0], [0]>} : vector<1x8x8xbf16>, vector<1x8x16xbf16>, vector<1x8x16xf32> -> vector<1x8x16xf32>
    "tpu.trace_stop"() : () -> ()
    %36 = vector.shape_cast %35 : vector<1x8x16xf32> to vector<8x16xf32>
    %37 = arith.truncf %36 : vector<8x16xf32> to vector<8x16xbf16>
    %c0_21 = arith.constant 0 : index
    %c16 = arith.constant 16 : index
    %38 = vector.load %arg18[%c0_21, %c16] : memref<8x96xbf16, #tpu.memory_space<vmem>>, vector<8x16xbf16>
    %39 = vector.shape_cast %38 : vector<8x16xbf16> to vector<1x8x16xbf16>
    %c0_22 = arith.constant 0 : index
    %c48 = arith.constant 48 : index
    %40 = vector.load %arg18[%c0_22, %c48] : memref<8x96xbf16, #tpu.memory_space<vmem>>, vector<8x16xbf16>
    %41 = vector.shape_cast %40 : vector<8x16xbf16> to vector<1x8x16xbf16>
    %c0_23 = arith.constant 0 : index
    %c80 = arith.constant 80 : index
    %42 = vector.load %arg18[%c0_23, %c80] : memref<8x96xbf16, #tpu.memory_space<vmem>>, vector<8x16xbf16>
    %43 = vector.shape_cast %42 : vector<8x16xbf16> to vector<1x8x16xbf16>
    "tpu.trace_start"() <{level = 10 : i32, message = "bqd,bkd->bqk"}> : () -> ()
    %cst_24 = arith.constant dense<0.000000e+00> : vector<1x8x8xf32>
    %44 = tpu.matmul %39, %41, %cst_24 {dimension_numbers = #tpu.dot_dimension_numbers<[2], [2], [1], [1], [0, 0, 0, 1, 1, 1], [0], [0]>} : vector<1x8x16xbf16>, vector<1x8x16xbf16>, vector<1x8x8xf32> -> vector<1x8x8xf32>
    "tpu.trace_stop"() : () -> ()
    %45 = vector.broadcast %14 : vector<1x1x8xf32> to vector<1x8x8xf32>
    %46 = arith.addf %44, %45 : vector<1x8x8xf32>
    %cst_25 = arith.constant dense<0xFF800000> : vector<1x8xf32>
    %47 = vector.multi_reduction <maximumf>, %46, %cst_25 [2] : vector<1x8x8xf32> to vector<1x8xf32>
    %48 = vector.shape_cast %47 : vector<1x8xf32> to vector<1x8x1xf32>
    %49 = vector.broadcast %48 : vector<1x8x1xf32> to vector<1x8x8xf32>
    %50 = arith.subf %46, %49 : vector<1x8x8xf32>
    %51 = math.exp %50 : vector<1x8x8xf32>
    %cst_26 = arith.constant dense<0.000000e+00> : vector<1x8xf32>
    %52 = vector.multi_reduction <add>, %51, %cst_26 [2] : vector<1x8x8xf32> to vector<1x8xf32>
    %53 = vector.shape_cast %52 : vector<1x8xf32> to vector<1x8x1xf32>
    %54 = tpu.reciprocal %53 {approx = true} : vector<1x8x1xf32> -> vector<1x8x1xf32>
    %55 = vector.broadcast %54 : vector<1x8x1xf32> to vector<1x8x8xf32>
    %56 = arith.mulf %51, %55 : vector<1x8x8xf32>
    %57 = arith.truncf %56 : vector<1x8x8xf32> to vector<1x8x8xbf16>
    "tpu.trace_start"() <{level = 10 : i32, message = "bqk,bkd->bqd"}> : () -> ()
    %cst_27 = arith.constant dense<0.000000e+00> : vector<1x8x16xf32>
    %58 = tpu.matmul %57, %43, %cst_27 {dimension_numbers = #tpu.dot_dimension_numbers<[2], [1], [1], [2], [0, 0, 0, 1, 1, 2], [0], [0]>} : vector<1x8x8xbf16>, vector<1x8x16xbf16>, vector<1x8x16xf32> -> vector<1x8x16xf32>
    "tpu.trace_stop"() : () -> ()
    %59 = vector.shape_cast %58 : vector<1x8x16xf32> to vector<8x16xf32>
    %60 = arith.truncf %59 : vector<8x16xf32> to vector<8x16xbf16>
    %61 = tpu.concatenate %37, %60 in 1 : vector<8x16xbf16>, vector<8x16xbf16> -> vector<8x32xbf16>
    %c0_28 = arith.constant 0 : index
    %c0_29 = arith.constant 0 : index
    %c0_30 = arith.constant 0 : index
    %62 = vector.load %arg6[%c0_28, %c0_29, %c0_30] : memref<1x32x32xbf16, #tpu.memory_space<vmem>>, vector<1x32x32xbf16>
    %63 = vector.shape_cast %62 : vector<1x32x32xbf16> to vector<32x32xbf16>
    %cst_31 = arith.constant dense<0.000000e+00> : vector<8x32xf32>
    %64 = tpu.matmul %61, %63, %cst_31 {dimension_numbers = #tpu.dot_dimension_numbers<[1], [0], [0], [1], [0, 0, 1, 1], [], []>} : vector<8x32xbf16>, vector<32x32xbf16>, vector<8x32xf32> -> vector<8x32xf32>
    %c0_32 = arith.constant 0 : index
    %c0_33 = arith.constant 0 : index
    %c0_34 = arith.constant 0 : index
    %65 = vector.load %arg7[%c0_32, %c0_33, %c0_34] : memref<1x1x32xf32, #tpu.memory_space<vmem>>, vector<1x1x32xf32>
    %66 = vector.shape_cast %65 : vector<1x1x32xf32> to vector<1x32xf32>
    %67 = vector.broadcast %66 : vector<1x32xf32> to vector<8x32xf32>
    %68 = arith.addf %64, %67 : vector<8x32xf32>
    %69 = arith.addf %68, %3 : vector<8x32xf32>
    %cst_35 = arith.constant dense<0.000000e+00> : vector<8xf32>
    %70 = vector.multi_reduction <add>, %69, %cst_35 [1] : vector<8x32xf32> to vector<8xf32>
    %71 = vector.shape_cast %70 : vector<8xf32> to vector<8x1xf32>
    %cst_36 = arith.constant 3.125000e-02 : f32
    %72 = vector.broadcast %cst_36 : f32 to vector<8x1xf32>
    %73 = arith.mulf %71, %72 : vector<8x1xf32>
    %74 = arith.mulf %69, %69 : vector<8x32xf32>
    %cst_37 = arith.constant dense<0.000000e+00> : vector<8xf32>
    %75 = vector.multi_reduction <add>, %74, %cst_37 [1] : vector<8x32xf32> to vector<8xf32>
    %76 = vector.shape_cast %75 : vector<8xf32> to vector<8x1xf32>
    %cst_38 = arith.constant 3.125000e-02 : f32
    %77 = vector.broadcast %cst_38 : f32 to vector<8x1xf32>
    %78 = arith.mulf %76, %77 : vector<8x1xf32>
    %79 = arith.mulf %73, %73 : vector<8x1xf32>
    %80 = arith.subf %78, %79 : vector<8x1xf32>
    %cst_39 = arith.constant 0.000000e+00 : f32
    %81 = vector.broadcast %cst_39 : f32 to vector<8x1xf32>
    %82 = arith.maximumf %80, %81 : vector<8x1xf32>
    %83 = vector.broadcast %73 : vector<8x1xf32> to vector<8x32xf32>
    %84 = arith.subf %69, %83 : vector<8x32xf32>
    %cst_40 = arith.constant 9.99999974E-6 : f32
    %85 = vector.broadcast %cst_40 : f32 to vector<8x1xf32>
    %86 = arith.addf %82, %85 : vector<8x1xf32>
    %87 = math.rsqrt %86 : vector<8x1xf32>
    %88 = vector.broadcast %87 : vector<8x1xf32> to vector<8x32xf32>
    %89 = arith.mulf %84, %88 : vector<8x32xf32>
    %c0_41 = arith.constant 0 : index
    %c0_42 = arith.constant 0 : index
    %c0_43 = arith.constant 0 : index
    %90 = vector.load %arg8[%c0_41, %c0_42, %c0_43] : memref<1x1x32xf32, #tpu.memory_space<vmem>>, vector<1x1x32xf32>
    %91 = vector.shape_cast %90 : vector<1x1x32xf32> to vector<1x32xf32>
    %92 = vector.broadcast %91 : vector<1x32xf32> to vector<8x32xf32>
    %93 = arith.mulf %89, %92 : vector<8x32xf32>
    %c0_44 = arith.constant 0 : index
    %c0_45 = arith.constant 0 : index
    %c0_46 = arith.constant 0 : index
    %94 = vector.load %arg9[%c0_44, %c0_45, %c0_46] : memref<1x1x32xf32, #tpu.memory_space<vmem>>, vector<1x1x32xf32>
    %95 = vector.shape_cast %94 : vector<1x1x32xf32> to vector<1x32xf32>
    %96 = vector.broadcast %95 : vector<1x32xf32> to vector<8x32xf32>
    %97 = arith.addf %93, %96 : vector<8x32xf32>
    %c0_47 = arith.constant 0 : index
    %c0_48 = arith.constant 0 : index
    %98 = vector.load %arg17[%c0_47, %c0_48] : memref<8x32xf32, #tpu.memory_space<vmem>>, vector<8x32xf32>
    tpu.vector_store %arg17[%c0_47, %c0_48], %97 {strides = array<i32>} : memref<8x32xf32, #tpu.memory_space<vmem>>, vector<8x32xf32>,
    %c0_49 = arith.constant 0 : index
    %c0_50 = arith.constant 0 : index
    %c0_51 = arith.constant 0 : index
    %99 = vector.load %arg11[%c0_49, %c0_50, %c0_51] : memref<1x1x64xf32, #tpu.memory_space<vmem>>, vector<1x1x64xf32>
    %100 = vector.shape_cast %99 : vector<1x1x64xf32> to vector<1x64xf32>
    %c0_52 = arith.constant 0 : index
    %c0_53 = arith.constant 0 : index
    %c0_54 = arith.constant 0 : index
    %101 = vector.load %arg13[%c0_52, %c0_53, %c0_54] : memref<1x1x32xf32, #tpu.memory_space<vmem>>, vector<1x1x32xf32>
    %102 = vector.shape_cast %101 : vector<1x1x32xf32> to vector<1x32xf32>
    %c0_55 = arith.constant 0 : index
    %c0_56 = arith.constant 0 : index
    %c0_57 = arith.constant 0 : index
    %103 = vector.load %arg14[%c0_55, %c0_56, %c0_57] : memref<1x1x32xf32, #tpu.memory_space<vmem>>, vector<1x1x32xf32>
    %104 = vector.shape_cast %103 : vector<1x1x32xf32> to vector<1x32xf32>
    %c0_58 = arith.constant 0 : index
    %c0_59 = arith.constant 0 : index
    %c0_60 = arith.constant 0 : index
    %105 = vector.load %arg15[%c0_58, %c0_59, %c0_60] : memref<1x1x32xf32, #tpu.memory_space<vmem>>, vector<1x1x32xf32>
    %106 = vector.shape_cast %105 : vector<1x1x32xf32> to vector<1x32xf32>
    %c0_61 = arith.constant 0 : index
    %c0_62 = arith.constant 0 : index
    %107 = vector.load %arg17[%c0_61, %c0_62] : memref<8x32xf32, #tpu.memory_space<vmem>>, vector<8x32xf32>
    %108 = arith.truncf %107 : vector<8x32xf32> to vector<8x32xbf16>
    %c0_63 = arith.constant 0 : index
    %c0_64 = arith.constant 0 : index
    %c0_65 = arith.constant 0 : index
    %109 = vector.load %arg10[%c0_63, %c0_64, %c0_65] : memref<1x32x64xbf16, #tpu.memory_space<vmem>>, vector<1x32x64xbf16>
    %110 = vector.shape_cast %109 : vector<1x32x64xbf16> to vector<32x64xbf16>
    %cst_66 = arith.constant dense<0.000000e+00> : vector<8x64xf32>
    %111 = tpu.matmul %108, %110, %cst_66 {dimension_numbers = #tpu.dot_dimension_numbers<[1], [0], [0], [1], [0, 0, 1, 1], [], []>} : vector<8x32xbf16>, vector<32x64xbf16>, vector<8x64xf32> -> vector<8x64xf32>
    %112 = vector.broadcast %100 : vector<1x64xf32> to vector<8x64xf32>
    %113 = arith.addf %111, %112 : vector<8x64xf32>
    %cst_67 = arith.constant 0.000000e+00 : f32
    %114 = vector.broadcast %cst_67 : f32 to vector<8x64xf32>
    %115 = arith.maximumf %113, %114 : vector<8x64xf32>
    %116 = arith.truncf %115 : vector<8x64xf32> to vector<8x64xbf16>
    %c0_68 = arith.constant 0 : index
    %c0_69 = arith.constant 0 : index
    %c0_70 = arith.constant 0 : index
    %117 = vector.load %arg12[%c0_68, %c0_69, %c0_70] : memref<1x64x32xbf16, #tpu.memory_space<vmem>>, vector<1x64x32xbf16>
    %118 = vector.shape_cast %117 : vector<1x64x32xbf16> to vector<64x32xbf16>
    %cst_71 = arith.constant dense<0.000000e+00> : vector<8x32xf32>
    %119 = tpu.matmul %116, %118, %cst_71 {dimension_numbers = #tpu.dot_dimension_numbers<[1], [0], [0], [1], [0, 0, 1, 1], [], []>} : vector<8x64xbf16>, vector<64x32xbf16>, vector<8x32xf32> -> vector<8x32xf32>
    %120 = vector.broadcast %102 : vector<1x32xf32> to vector<8x32xf32>
    %121 = arith.addf %119, %120 : vector<8x32xf32>
    %122 = arith.addf %121, %107 : vector<8x32xf32>
    %cst_72 = arith.constant dense<0.000000e+00> : vector<8xf32>
    %123 = vector.multi_reduction <add>, %122, %cst_72 [1] : vector<8x32xf32> to vector<8xf32>
    %124 = vector.shape_cast %123 : vector<8xf32> to vector<8x1xf32>
    %cst_73 = arith.constant 3.125000e-02 : f32
    %125 = vector.broadcast %cst_73 : f32 to vector<8x1xf32>
    %126 = arith.mulf %124, %125 : vector<8x1xf32>
    %127 = arith.mulf %122, %122 : vector<8x32xf32>
    %cst_74 = arith.constant dense<0.000000e+00> : vector<8xf32>
    %128 = vector.multi_reduction <add>, %127, %cst_74 [1] : vector<8x32xf32> to vector<8xf32>
    %129 = vector.shape_cast %128 : vector<8xf32> to vector<8x1xf32>
    %cst_75 = arith.constant 3.125000e-02 : f32
    %130 = vector.broadcast %cst_75 : f32 to vector<8x1xf32>
    %131 = arith.mulf %129, %130 : vector<8x1xf32>
    %132 = arith.mulf %126, %126 : vector<8x1xf32>
    %133 = arith.subf %131, %132 : vector<8x1xf32>
    %cst_76 = arith.constant 0.000000e+00 : f32
    %134 = vector.broadcast %cst_76 : f32 to vector<8x1xf32>
    %135 = arith.maximumf %133, %134 : vector<8x1xf32>
    %136 = vector.broadcast %126 : vector<8x1xf32> to vector<8x32xf32>
    %137 = arith.subf %122, %136 : vector<8x32xf32>
    %cst_77 = arith.constant 9.99999974E-6 : f32
    %138 = vector.broadcast %cst_77 : f32 to vector<8x1xf32>
    %139 = arith.addf %135, %138 : vector<8x1xf32>
    %140 = math.rsqrt %139 : vector<8x1xf32>
    %141 = vector.broadcast %140 : vector<8x1xf32> to vector<8x32xf32>
    %142 = arith.mulf %137, %141 : vector<8x32xf32>
    %143 = vector.broadcast %104 : vector<1x32xf32> to vector<8x32xf32>
    %144 = arith.mulf %142, %143 : vector<8x32xf32>
    %145 = vector.broadcast %106 : vector<1x32xf32> to vector<8x32xf32>
    %146 = arith.addf %144, %145 : vector<8x32xf32>
    %c0_78 = arith.constant 0 : index
    %c0_79 = arith.constant 0 : index
    %147 = vector.load %arg17[%c0_78, %c0_79] : memref<8x32xf32, #tpu.memory_space<vmem>>, vector<8x32xf32>
    tpu.vector_store %arg17[%c0_78, %c0_79], %146 {strides = array<i32>} : memref<8x32xf32, #tpu.memory_space<vmem>>, vector<8x32xf32>,
    %c1_i32 = arith.constant 1 : i32
    %148 = arith.cmpi eq, %arg1, %c1_i32 : i32
    %149 = arith.extui %148 : i1 to i32
    %c0_i32_80 = arith.constant 0 : i32
    %150 = arith.cmpi ne, %149, %c0_i32_80 : i32
    scf.if %150 {
      %c0_81 = arith.constant 0 : index
      %c0_82 = arith.constant 0 : index
      %151 = vector.load %arg17[%c0_81, %c0_82] : memref<8x32xf32, #tpu.memory_space<vmem>>, vector<8x32xf32>
      %152 = vector.shape_cast %151 : vector<8x32xf32> to vector<1x8x32xf32>
      %c0_83 = arith.constant 0 : index
      %c0_84 = arith.constant 0 : index
      %c0_85 = arith.constant 0 : index
      %153 = vector.load %arg16[%c0_83, %c0_84, %c0_85] : memref<1x8x32xf32, #tpu.memory_space<vmem>>, vector<1x8x32xf32>
      tpu.vector_store %arg16[%c0_83, %c0_84, %c0_85], %152 {strides = array<i32>} : memref<1x8x32xf32, #tpu.memory_space<vmem>>, vector<1x8x32xf32>,
    } else {
    }
    return
  }
  func.func @transform_0(%arg0: i32, %arg1: i32) -> (i32, i32, i32) {
    %c0_i32 = arith.constant 0 : i32
    %c0_i32_0 = arith.constant 0 : i32
    %c0_i32_1 = arith.constant 0 : i32
    return %arg0, %c0_i32, %c0_i32_0 : i32, i32, i32
  }
  func.func @transform_1(%arg0: i32, %arg1: i32) -> (i32, i32, i32) {
    %c0_i32 = arith.constant 0 : i32
    %c0_i32_0 = arith.constant 0 : i32
    %c0_i32_1 = arith.constant 0 : i32
    return %arg0, %c0_i32, %c0_i32_0 : i32, i32, i32
  }
  func.func @transform_2(%arg0: i32, %arg1: i32) -> (i32, i32, i32) {
    %c0_i32 = arith.constant 0 : i32
    %c0_i32_0 = arith.constant 0 : i32
    %c0_i32_1 = arith.constant 0 : i32
    return %arg1, %c0_i32, %c0_i32_0 : i32, i32, i32
  }
  func.func @transform_3(%arg0: i32, %arg1: i32) -> (i32, i32, i32) {
    %c0_i32 = arith.constant 0 : i32
    %c0_i32_0 = arith.constant 0 : i32
    %c0_i32_1 = arith.constant 0 : i32
    return %arg1, %c0_i32, %c0_i32_0 : i32, i32, i32
  }
  func.func @transform_4(%arg0: i32, %arg1: i32) -> (i32, i32, i32) {
    %c0_i32 = arith.constant 0 : i32
    %c0_i32_0 = arith.constant 0 : i32
    %c0_i32_1 = arith.constant 0 : i32
    return %arg1, %c0_i32, %c0_i32_0 : i32, i32, i32
  }
  func.func @transform_5(%arg0: i32, %arg1: i32) -> (i32, i32, i32) {
    %c0_i32 = arith.constant 0 : i32
    %c0_i32_0 = arith.constant 0 : i32
    %c0_i32_1 = arith.constant 0 : i32
    return %arg1, %c0_i32, %c0_i32_0 : i32, i32, i32
  }
  func.func @transform_6(%arg0: i32, %arg1: i32) -> (i32, i32, i32) {
    %c0_i32 = arith.constant 0 : i32
    %c0_i32_0 = arith.constant 0 : i32
    %c0_i32_1 = arith.constant 0 : i32
    return %arg1, %c0_i32, %c0_i32_0 : i32, i32, i32
  }
  func.func @transform_7(%arg0: i32, %arg1: i32) -> (i32, i32, i32) {
    %c0_i32 = arith.constant 0 : i32
    %c0_i32_0 = arith.constant 0 : i32
    %c0_i32_1 = arith.constant 0 : i32
    return %arg1, %c0_i32, %c0_i32_0 : i32, i32, i32
  }
  func.func @transform_8(%arg0: i32, %arg1: i32) -> (i32, i32, i32) {
    %c0_i32 = arith.constant 0 : i32
    %c0_i32_0 = arith.constant 0 : i32
    %c0_i32_1 = arith.constant 0 : i32
    return %arg1, %c0_i32, %c0_i32_0 : i32, i32, i32
  }
  func.func @transform_9(%arg0: i32, %arg1: i32) -> (i32, i32, i32) {
    %c0_i32 = arith.constant 0 : i32
    %c0_i32_0 = arith.constant 0 : i32
    %c0_i32_1 = arith.constant 0 : i32
    return %arg1, %c0_i32, %c0_i32_0 : i32, i32, i32
  }
  func.func @transform_10(%arg0: i32, %arg1: i32) -> (i32, i32, i32) {
    %c0_i32 = arith.constant 0 : i32
    %c0_i32_0 = arith.constant 0 : i32
    %c0_i32_1 = arith.constant 0 : i32
    return %arg1, %c0_i32, %c0_i32_0 : i32, i32, i32
  }
  func.func @transform_11(%arg0: i32, %arg1: i32) -> (i32, i32, i32) {
    %c0_i32 = arith.constant 0 : i32
    %c0_i32_0 = arith.constant 0 : i32
    %c0_i32_1 = arith.constant 0 : i32
    return %arg1, %c0_i32, %c0_i32_0 : i32, i32, i32
  }
  func.func @transform_12(%arg0: i32, %arg1: i32) -> (i32, i32, i32) {
    %c0_i32 = arith.constant 0 : i32
    %c0_i32_0 = arith.constant 0 : i32
    %c0_i32_1 = arith.constant 0 : i32
    return %arg1, %c0_i32, %c0_i32_0 : i32, i32, i32
  }
  func.func @transform_13(%arg0: i32, %arg1: i32) -> (i32, i32, i32) {
    %c0_i32 = arith.constant 0 : i32
    %c0_i32_0 = arith.constant 0 : i32
    %c0_i32_1 = arith.constant 0 : i32
    return %arg1, %c0_i32, %c0_i32_0 : i32, i32, i32
  }
  func.func @transform_14(%arg0: i32, %arg1: i32) -> (i32, i32, i32) {
    %c0_i32 = arith.constant 0 : i32
    %c0_i32_0 = arith.constant 0 : i32
    %c0_i32_1 = arith.constant 0 : i32
    return %arg0, %c0_i32, %c0_i32_0 : i32, i32, i32
  }
}

</mosaic_0001>

<llo_original>
// kernel: tpu_custom_call.1
$region0: #{tpu_custom_call.1}
  #allocation0 [shape = 'u32[]', space=smem, size = 0x4, offset = 0x4, fixed_abs, tag = 'smem constant byte address 0x4 - core index']
  #allocation1 [shape = 'u32[72,128]{1,0:T(1,128)}', space=vmem, size = 0x9000, scoped, tag = 'internal scratch']
  #allocation2 [shape = 'f32[8,32]{1,0:T(8,128)}', space=vmem, size = 0x1000, scoped, tag = 'scratch operand']
  #allocation3 [shape = 'bf16[8,96]{1,0:T(8,128)(2,1)}', space=vmem, size = 0x800, scoped, tag = 'scratch operand']
  %s0 = inlined_call_operand.hbm [shape: bf16[2,8,32], index: 0, kind: input, shape index: {}]
  %s1 = inlined_call_operand.hbm [shape: f32[2,1,8], index: 1, kind: input, shape index: {}]
  %s2 = inlined_call_operand.vmem [shape: bf16[2,32,96], index: 2, kind: input, shape index: {}]
  %s3 = inlined_call_operand.hbm [shape: f32[2,1,96], index: 3, kind: input, shape index: {}]
  %s4 = inlined_call_operand.vmem [shape: bf16[2,32,32], index: 4, kind: input, shape index: {}]
  %s5 = inlined_call_operand.vmem [shape: f32[2,1,32], index: 5, kind: input, shape index: {}]
  %s6 = inlined_call_operand.vmem [shape: f32[2,1,32], index: 6, kind: input, shape index: {}]
  %s7 = inlined_call_operand.hbm [shape: f32[2,1,32], index: 7, kind: input, shape index: {}]
  %s8 = inlined_call_operand.vmem [shape: bf16[2,32,64], index: 8, kind: input, shape index: {}]
  %s9 = inlined_call_operand.vmem [shape: f32[2,1,64], index: 9, kind: input, shape index: {}]
  %s10 = inlined_call_operand.vmem [shape: bf16[2,64,32], index: 10, kind: input, shape index: {}]
  %s11 = inlined_call_operand.vmem [shape: f32[2,1,32], index: 11, kind: input, shape index: {}]
  %s12 = inlined_call_operand.vmem [shape: f32[2,1,32], index: 12, kind: input, shape index: {}]
  %s13 = inlined_call_operand.hbm [shape: f32[2,1,32], index: 13, kind: input, shape index: {}]
  %s14 = inlined_call_operand.hbm [shape: f32[2,8,32], index: 14, kind: output, shape index: {}]
  %s15 = sld [smem:[#allocation0]]
  $region117: #{tpu_custom_call.1} parent=0
    _
  %s17 = ssub.s32 1, %s15
  %s18 = scalar_select 0, %s17, %s15
  $region1: #{tpu_custom_call.1} parent=0
    #allocation4 [shape = 'u8[4096]{0}', space=vmem, size = 0x1000, scoped, tag = 'input window, operand 0']
    #allocation5 [shape = 's32[2]{0}', space=sflag, size = 0x8, scoped, tag = 'scoped memory for tpu_custom_call.1']
    #allocation6 [shape = 's32[2]{0}', space=sflag, size = 0x8, scoped, tag = 'scoped memory for tpu_custom_call.1']
    #allocation7 [shape = 'u8[1024]{0}', space=vmem, size = 0x400, scoped, tag = 'input window, operand 1']
    #allocation8 [shape = 's32[2]{0}', space=sflag, size = 0x8, scoped, tag = 'scoped memory for tpu_custom_call.1']
    #allocation9 [shape = 'u8[1024]{0}', space=vmem, size = 0x400, scoped, tag = 'input window, operand 3']
    #allocation10 [shape = 'u8[1024]{0}', space=vmem, size = 0x400, scoped, tag = 'input window, operand 7']
    #allocation11 [shape = 's32[2]{0}', space=sflag, size = 0x8, scoped, tag = 'scoped memory for tpu_custom_call.1']
    #allocation12 [shape = 'u8[1024]{0}', space=vmem, size = 0x400, scoped, tag = 'input window, operand 13']
    #allocation13 [shape = 'u8[8192]{0}', space=vmem, size = 0x2000, scoped, tag = 'output window, operand 0']
    %19 = vsyncpa [#allocation5], 0
    %s20 = scalar_lea.sflag [#allocation5], 1
    %21 = vsyncpa %s20, 0
    %22 = vsyncpa [#allocation8], 0
    %s23 = scalar_lea.sflag [#allocation8], 1
    %24 = vsyncpa %s23, 0
    %25 = vsyncpa [#allocation11], 0
    %s26 = scalar_lea.sflag [#allocation11], 1
    %27 = vsyncpa %s26, 0
    %28 = vsyncpa [#allocation6], 0
    %s29 = scalar_lea.sflag [#allocation6], 1
    %30 = vsyncpa %s29, 0
    loop: start=0, step=1, limit=6
    $region2: #{tpu_custom_call.1} parent=1 // loop_pre_header
      _
    $region3: #{tpu_custom_call.1} parent=1 // loop_header
      %s32 = sphi 0, %s36
      %p33 = scmp.ge.s32.totalorder %s32, 6
      %s39 = sphi 0, %s51
      %s40 = sphi 0, %s47
      %s41 = sphi 0, %s39
      %s42 = sphi 0, %s40
      %s43 = sphi 0, %s41
      %s44 = sphi 0, %s42
      %s54 = sphi 0, %s56
      %s57 = sphi 0, %s54
      %s58 = sphi 0, %s57
      %s74 = sphi 0, %s58
      %s80 = sphi 0, %s82
      %s83 = sphi 0, %s80
      %s84 = sphi 0, %s83
      %s100 = sphi 0, %s84
      %s106 = sphi 0, %s108
      %s109 = sphi 0, %s106
      %s110 = sphi 0, %s109
      %s126 = sphi 0, %s110
      %s132 = sphi 0, %s134
      %s135 = sphi 0, %s132
      %s136 = sphi 0, %s135
      %s152 = sphi 0, %s136
      %s158 = sphi 0, %s160
      %s161 = sphi 0, %s158
      %s162 = sphi 0, %s161
      %s178 = sphi 0, %s162
      %s184 = sphi 0, %s186
      %s187 = sphi 0, %s184
      %s188 = sphi 0, %s187
      %s204 = sphi 0, %s188
      %s210 = sphi 0, %s212
      %s213 = sphi 0, %s210
      %s214 = sphi 0, %s213
      %s230 = sphi 0, %s214
      %s236 = sphi 0, %s238
      %s239 = sphi 0, %s236
      %s240 = sphi 0, %s239
      %s256 = sphi 0, %s240
      %s262 = sphi 0, %s264
      %s265 = sphi 0, %s262
      %s266 = sphi 0, %s265
      %s282 = sphi 0, %s266
      %s288 = sphi 0, %s290
      %s291 = sphi 0, %s288
      %s292 = sphi 0, %s291
      %s308 = sphi 0, %s292
      %s314 = sphi 0, %s316
      %s317 = sphi 0, %s314
      %s318 = sphi 0, %s317
      %s334 = sphi 0, %s318
      %s340 = sphi 0, %s342
      %s343 = sphi 0, %s340
      %s344 = sphi 0, %s343
      %s360 = sphi 0, %s344
      %s366 = sphi 0, %s368
      %s369 = sphi 0, %s366
      %s370 = sphi 0, %s369
      %s386 = sphi 0, %s370
      %s392 = sphi 0, %s394
      %s395 = sphi 0, %s392
      %s396 = sphi 0, %s395
      %s412 = sphi 0, %s396
      %s418 = sphi 0, %s420
      %s421 = sphi 0, %s418
      %s422 = sphi 0, %s421
      %s438 = sphi 0, %s422
    $region4: #{tpu_custom_call.1} parent=1 // loop_header_branch
      %35 = sbr.rel (%p33) target = $region8
    $region5: #{tpu_custom_call.1} parent=1 // loop_body
      %s37 = ssub.s32 %s32, 1
      %s38 = ssub.s32 %s32, 2
      %s45 = sadd.s32 1, %s40
      %p46 = scmp.ge.s32.totalorder %s45, 2
      %s47 = scalar_select %p46, 0, %s45
      %s48 = sadd.s32 1, %s39
      %s49 = scalar_select %p46, %s48, %s39
      %p50 = scmp.ge.s32.totalorder %s49, 2
      %s51 = scalar_select %p50, 0, %s49
      %s52 = ssub.s32 %s39, %s51
      %p53 = scmp.eq.s32.totalorder %s52, 0
      %s55 = sadd.s32 %s54, 1
      %s56 = scalar_select %p53, %s54, %s55
      %p59 = pneg %p53
      %p60 = scmp.eq.s32.totalorder %s32, 3
      %p61 = por %p59, %p60
      %p62 = scmp.ne.s32.totalorder %s54, %s57
      %p63 = scmp.eq.s32.totalorder %s32, 0
      %p64 = por %p62, %p63
      %p65 = scmp.ne.s32.totalorder %s54, %s57
      %p66 = scmp.eq.s32.totalorder %s37, 3
      %p67 = por %p65, %p66
      %p68 = scmp.ne.s32.totalorder %s57, %s58
      %p69 = scmp.eq.s32.totalorder %s37, 0
      %p70 = por %p68, %p69
      %p71 = scmp.ne.s32.totalorder %s57, %s58
      %p72 = scmp.eq.s32.totalorder %s38, 3
      %p73 = por %p71, %p72
      %p75 = scmp.ne.s32.totalorder %s58, %s74
      %p76 = scmp.eq.s32.totalorder %s38, 0
      %p77 = por %p75, %p76
      %s78 = ssub.s32 %s39, %s51
      %p79 = scmp.eq.s32.totalorder %s78, 0
      %s81 = sadd.s32 %s80, 1
      %s82 = scalar_select %p79, %s80, %s81
      %p85 = pneg %p79
      %p86 = scmp.eq.s32.totalorder %s32, 3
      %p87 = por %p85, %p86
      %p88 = scmp.ne.s32.totalorder %s80, %s83
      %p89 = scmp.eq.s32.totalorder %s32, 0
      %p90 = por %p88, %p89
      %p91 = scmp.ne.s32.totalorder %s80, %s83
      %p92 = scmp.eq.s32.totalorder %s37, 3
      %p93 = por %p91, %p92
      %p94 = scmp.ne.s32.totalorder %s83, %s84
      %p95 = scmp.eq.s32.totalorder %s37, 0
      %p96 = por %p94, %p95
      %p97 = scmp.ne.s32.totalorder %s83, %s84
      %p98 = scmp.eq.s32.totalorder %s38, 3
      %p99 = por %p97, %p98
      %p101 = scmp.ne.s32.totalorder %s84, %s100
      %p102 = scmp.eq.s32.totalorder %s38, 0
      %p103 = por %p101, %p102
      %s104 = ssub.s32 %s40, %s47
      %p105 = scmp.eq.s32.totalorder %s104, 0
      %s107 = sadd.s32 %s106, 1
      %s108 = scalar_select %p105, %s106, %s107
      %p111 = pneg %p105
      %p112 = scmp.eq.s32.totalorder %s32, 3
      %p113 = por %p111, %p112
      %p114 = scmp.ne.s32.totalorder %s106, %s109
      %p115 = scmp.eq.s32.totalorder %s32, 0
      %p116 = por %p114, %p115
      %p117 = scmp.ne.s32.totalorder %s106, %s109
      %p118 = scmp.eq.s32.totalorder %s37, 3
      %p119 = por %p117, %p118
      %p120 = scmp.ne.s32.totalorder %s109, %s110
      %p121 = scmp.eq.s32.totalorder %s37, 0
      %p122 = por %p120, %p121
      %p123 = scmp.ne.s32.totalorder %s109, %s110
      %p124 = scmp.eq.s32.totalorder %s38, 3
      %p125 = por %p123, %p124
      %p127 = scmp.ne.s32.totalorder %s110, %s126
      %p128 = scmp.eq.s32.totalorder %s38, 0
      %p129 = por %p127, %p128
      %s130 = ssub.s32 %s40, %s47
      %p131 = scmp.eq.s32.totalorder %s130, 0
      %s133 = sadd.s32 %s132, 1
      %s134 = scalar_select %p131, %s132, %s133
      %p137 = pneg %p131
      %p138 = scmp.eq.s32.totalorder %s32, 3
      %p139 = por %p137, %p138
      %p140 = scmp.ne.s32.totalorder %s132, %s135
      %p141 = scmp.eq.s32.totalorder %s32, 0
      %p142 = por %p140, %p141
      %p143 = scmp.ne.s32.totalorder %s132, %s135
      %p144 = scmp.eq.s32.totalorder %s37, 3
      %p145 = por %p143, %p144
      %p146 = scmp.ne.s32.totalorder %s135, %s136
      %p147 = scmp.eq.s32.totalorder %s37, 0
      %p148 = por %p146, %p147
      %p149 = scmp.ne.s32.totalorder %s135, %s136
      %p150 = scmp.eq.s32.totalorder %s38, 3
      %p151 = por %p149, %p150
      %p153 = scmp.ne.s32.totalorder %s136, %s152
      %p154 = scmp.eq.s32.totalorder %s38, 0
      %p155 = por %p153, %p154
      %s156 = ssub.s32 %s40, %s47
      %p157 = scmp.eq.s32.totalorder %s156, 0
      %s159 = sadd.s32 %s158, 1
      %s160 = scalar_select %p157, %s158, %s159
      %p163 = pneg %p157
      %p164 = scmp.eq.s32.totalorder %s32, 3
      %p165 = por %p163, %p164
      %p166 = scmp.ne.s32.totalorder %s158, %s161
      %p167 = scmp.eq.s32.totalorder %s32, 0
      %p168 = por %p166, %p167
      %p169 = scmp.ne.s32.totalorder %s158, %s161
      %p170 = scmp.eq.s32.totalorder %s37, 3
      %p171 = por %p169, %p170
      %p172 = scmp.ne.s32.totalorder %s161, %s162
      %p173 = scmp.eq.s32.totalorder %s37, 0
      %p174 = por %p172, %p173
      %p175 = scmp.ne.s32.totalorder %s161, %s162
      %p176 = scmp.eq.s32.totalorder %s38, 3
      %p177 = por %p175, %p176
      %p179 = scmp.ne.s32.totalorder %s162, %s178
      %p180 = scmp.eq.s32.totalorder %s38, 0
      %p181 = por %p179, %p180
      %s182 = ssub.s32 %s40, %s47
      %p183 = scmp.eq.s32.totalorder %s182, 0
      %s185 = sadd.s32 %s184, 1
      %s186 = scalar_select %p183, %s184, %s185
      %p189 = pneg %p183
      %p190 = scmp.eq.s32.totalorder %s32, 3
      %p191 = por %p189, %p190
      %p192 = scmp.ne.s32.totalorder %s184, %s187
      %p193 = scmp.eq.s32.totalorder %s32, 0
      %p194 = por %p192, %p193
      %p195 = scmp.ne.s32.totalorder %s184, %s187
      %p196 = scmp.eq.s32.totalorder %s37, 3
      %p197 = por %p195, %p196
      %p198 = scmp.ne.s32.totalorder %s187, %s188
      %p199 = scmp.eq.s32.totalorder %s37, 0
      %p200 = por %p198, %p199
      %p201 = scmp.ne.s32.totalorder %s187, %s188
      %p202 = scmp.eq.s32.totalorder %s38, 3
      %p203 = por %p201, %p202
      %p205 = scmp.ne.s32.totalorder %s188, %s204
      %p206 = scmp.eq.s32.totalorder %s38, 0
      %p207 = por %p205, %p206
      %s208 = ssub.s32 %s40, %s47
      %p209 = scmp.eq.s32.totalorder %s208, 0
      %s211 = sadd.s32 %s210, 1
      %s212 = scalar_select %p209, %s210, %s211
      %p215 = pneg %p209
      %p216 = scmp.eq.s32.totalorder %s32, 3
      %p217 = por %p215, %p216
      %p218 = scmp.ne.s32.totalorder %s210, %s213
      %p219 = scmp.eq.s32.totalorder %s32, 0
      %p220 = por %p218, %p219
      %p221 = scmp.ne.s32.totalorder %s210, %s213
      %p222 = scmp.eq.s32.totalorder %s37, 3
      %p223 = por %p221, %p222
      %p224 = scmp.ne.s32.totalorder %s213, %s214
      %p225 = scmp.eq.s32.totalorder %s37, 0
      %p226 = por %p224, %p225
      %p227 = scmp.ne.s32.totalorder %s213, %s214
      %p228 = scmp.eq.s32.totalorder %s38, 3
      %p229 = por %p227, %p228
      %p231 = scmp.ne.s32.totalorder %s214, %s230
      %p232 = scmp.eq.s32.totalorder %s38, 0
      %p233 = por %p231, %p232
      %s234 = ssub.s32 %s40, %s47
      %p235 = scmp.eq.s32.totalorder %s234, 0
      %s237 = sadd.s32 %s236, 1
      %s238 = scalar_select %p235, %s236, %s237
      %p241 = pneg %p235
      %p242 = scmp.eq.s32.totalorder %s32, 3
      %p243 = por %p241, %p242
      %p244 = scmp.ne.s32.totalorder %s236, %s239
      %p245 = scmp.eq.s32.totalorder %s32, 0
      %p246 = por %p244, %p245
      %p247 = scmp.ne.s32.totalorder %s236, %s239
      %p248 = scmp.eq.s32.totalorder %s37, 3
      %p249 = por %p247, %p248
      %p250 = scmp.ne.s32.totalorder %s239, %s240
      %p251 = scmp.eq.s32.totalorder %s37, 0
      %p252 = por %p250, %p251
      %p253 = scmp.ne.s32.totalorder %s239, %s240
      %p254 = scmp.eq.s32.totalorder %s38, 3
      %p255 = por %p253, %p254
      %p257 = scmp.ne.s32.totalorder %s240, %s256
      %p258 = scmp.eq.s32.totalorder %s38, 0
      %p259 = por %p257, %p258
      %s260 = ssub.s32 %s40, %s47
      %p261 = scmp.eq.s32.totalorder %s260, 0
      %s263 = sadd.s32 %s262, 1
      %s264 = scalar_select %p261, %s262, %s263
      %p267 = pneg %p261
      %p268 = scmp.eq.s32.totalorder %s32, 3
      %p269 = por %p267, %p268
      %p270 = scmp.ne.s32.totalorder %s262, %s265
      %p271 = scmp.eq.s32.totalorder %s32, 0
      %p272 = por %p270, %p271
      %p273 = scmp.ne.s32.totalorder %s262, %s265
      %p274 = scmp.eq.s32.totalorder %s37, 3
      %p275 = por %p273, %p274
      %p276 = scmp.ne.s32.totalorder %s265, %s266
      %p277 = scmp.eq.s32.totalorder %s37, 0
      %p278 = por %p276, %p277
      %p279 = scmp.ne.s32.totalorder %s265, %s266
      %p280 = scmp.eq.s32.totalorder %s38, 3
      %p281 = por %p279, %p280
      %p283 = scmp.ne.s32.totalorder %s266, %s282
      %p284 = scmp.eq.s32.totalorder %s38, 0
      %p285 = por %p283, %p284
      %s286 = ssub.s32 %s40, %s47
      %p287 = scmp.eq.s32.totalorder %s286, 0
      %s289 = sadd.s32 %s288, 1
      %s290 = scalar_select %p287, %s288, %s289
      %p293 = pneg %p287
      %p294 = scmp.eq.s32.totalorder %s32, 3
      %p295 = por %p293, %p294
      %p296 = scmp.ne.s32.totalorder %s288, %s291
      %p297 = scmp.eq.s32.totalorder %s32, 0
      %p298 = por %p296, %p297
      %p299 = scmp.ne.s32.totalorder %s288, %s291
      %p300 = scmp.eq.s32.totalorder %s37, 3
      %p301 = por %p299, %p300
      %p302 = scmp.ne.s32.totalorder %s291, %s292
      %p303 = scmp.eq.s32.totalorder %s37, 0
      %p304 = por %p302, %p303
      %p305 = scmp.ne.s32.totalorder %s291, %s292
      %p306 = scmp.eq.s32.totalorder %s38, 3
      %p307 = por %p305, %p306
      %p309 = scmp.ne.s32.totalorder %s292, %s308
      %p310 = scmp.eq.s32.totalorder %s38, 0
      %p311 = por %p309, %p310
      %s312 = ssub.s32 %s40, %s47
      %p313 = scmp.eq.s32.totalorder %s312, 0
      %s315 = sadd.s32 %s314, 1
      %s316 = scalar_select %p313, %s314, %s315
      %p319 = pneg %p313
      %p320 = scmp.eq.s32.totalorder %s32, 3
      %p321 = por %p319, %p320
      %p322 = scmp.ne.s32.totalorder %s314, %s317
      %p323 = scmp.eq.s32.totalorder %s32, 0
      %p324 = por %p322, %p323
      %p325 = scmp.ne.s32.totalorder %s314, %s317
      %p326 = scmp.eq.s32.totalorder %s37, 3
      %p327 = por %p325, %p326
      %p328 = scmp.ne.s32.totalorder %s317, %s318
      %p329 = scmp.eq.s32.totalorder %s37, 0
      %p330 = por %p328, %p329
      %p331 = scmp.ne.s32.totalorder %s317, %s318
      %p332 = scmp.eq.s32.totalorder %s38, 3
      %p333 = por %p331, %p332
      %p335 = scmp.ne.s32.totalorder %s318, %s334
      %p336 = scmp.eq.s32.totalorder %s38, 0
      %p337 = por %p335, %p336
      %s338 = ssub.s32 %s40, %s47
      %p339 = scmp.eq.s32.totalorder %s338, 0
      %s341 = sadd.s32 %s340, 1
      %s342 = scalar_select %p339, %s340, %s341
      %p345 = pneg %p339
      %p346 = scmp.eq.s32.totalorder %s32, 3
      %p347 = por %p345, %p346
      %p348 = scmp.ne.s32.totalorder %s340, %s343
      %p349 = scmp.eq.s32.totalorder %s32, 0
      %p350 = por %p348, %p349
      %p351 = scmp.ne.s32.totalorder %s340, %s343
      %p352 = scmp.eq.s32.totalorder %s37, 3
      %p353 = por %p351, %p352
      %p354 = scmp.ne.s32.totalorder %s343, %s344
      %p355 = scmp.eq.s32.totalorder %s37, 0
      %p356 = por %p354, %p355
      %p357 = scmp.ne.s32.totalorder %s343, %s344
      %p358 = scmp.eq.s32.totalorder %s38, 3
      %p359 = por %p357, %p358
      %p361 = scmp.ne.s32.totalorder %s344, %s360
      %p362 = scmp.eq.s32.totalorder %s38, 0
      %p363 = por %p361, %p362
      %s364 = ssub.s32 %s40, %s47
      %p365 = scmp.eq.s32.totalorder %s364, 0
      %s367 = sadd.s32 %s366, 1
      %s368 = scalar_select %p365, %s366, %s367
      %p371 = pneg %p365
      %p372 = scmp.eq.s32.totalorder %s32, 3
      %p373 = por %p371, %p372
      %p374 = scmp.ne.s32.totalorder %s366, %s369
      %p375 = scmp.eq.s32.totalorder %s32, 0
      %p376 = por %p374, %p375
      %p377 = scmp.ne.s32.totalorder %s366, %s369
      %p378 = scmp.eq.s32.totalorder %s37, 3
      %p379 = por %p377, %p378
      %p380 = scmp.ne.s32.totalorder %s369, %s370
      %p381 = scmp.eq.s32.totalorder %s37, 0
      %p382 = por %p380, %p381
      %p383 = scmp.ne.s32.totalorder %s369, %s370
      %p384 = scmp.eq.s32.totalorder %s38, 3
      %p385 = por %p383, %p384
      %p387 = scmp.ne.s32.totalorder %s370, %s386
      %p388 = scmp.eq.s32.totalorder %s38, 0
      %p389 = por %p387, %p388
      %s390 = ssub.s32 %s40, %s47
      %p391 = scmp.eq.s32.totalorder %s390, 0
      %s393 = sadd.s32 %s392, 1
      %s394 = scalar_select %p391, %s392, %s393
      %p397 = pneg %p391
      %p398 = scmp.eq.s32.totalorder %s32, 3
      %p399 = por %p397, %p398
      %p400 = scmp.ne.s32.totalorder %s392, %s395
      %p401 = scmp.eq.s32.totalorder %s32, 0
      %p402 = por %p400, %p401
      %p403 = scmp.ne.s32.totalorder %s392, %s395
      %p404 = scmp.eq.s32.totalorder %s37, 3
      %p405 = por %p403, %p404
      %p406 = scmp.ne.s32.totalorder %s395, %s396
      %p407 = scmp.eq.s32.totalorder %s37, 0
      %p408 = por %p406, %p407
      %p409 = scmp.ne.s32.totalorder %s395, %s396
      %p410 = scmp.eq.s32.totalorder %s38, 3
      %p411 = por %p409, %p410
      %p413 = scmp.ne.s32.totalorder %s396, %s412
      %p414 = scmp.eq.s32.totalorder %s38, 0
      %p415 = por %p413, %p414
      %s416 = ssub.s32 %s39, %s51
      %p417 = scmp.eq.s32.totalorder %s416, 0
      %s419 = sadd.s32 %s418, 1
      %s420 = scalar_select %p417, %s418, %s419
      %p423 = pneg %p417
      %p424 = scmp.eq.s32.totalorder %s32, 3
      %p425 = por %p423, %p424
      %p426 = scmp.ne.s32.totalorder %s418, %s421
      %p427 = scmp.eq.s32.totalorder %s32, 0
      %p428 = por %p426, %p427
      %p429 = scmp.ne.s32.totalorder %s418, %s421
      %p430 = scmp.eq.s32.totalorder %s37, 3
      %p431 = por %p429, %p430
      %p432 = scmp.ne.s32.totalorder %s421, %s422
      %p433 = scmp.eq.s32.totalorder %s37, 0
      %p434 = por %p432, %p433
      %p435 = scmp.ne.s32.totalorder %s421, %s422
      %p436 = scmp.eq.s32.totalorder %s38, 3
      %p437 = por %p435, %p436
      %p439 = scmp.ne.s32.totalorder %s422, %s438
      %p440 = scmp.eq.s32.totalorder %s38, 0
      %p441 = por %p439, %p440
      %p442 = scmp.le.s32.totalorder 1, %s32
      %p443 = scmp.lt.s32.totalorder %s32, 5
      %p444 = pnand %p442, %p443
      %p445 = pneg %p444
      // Predicated region
      $region9: #{tpu_custom_call.1} parent=5 // pred_check
        _
      $region10: #{tpu_custom_call.1} parent=5 // pred_check_branch
        %447 = sbr.rel (%p444) target = $region12
      $region11: #{tpu_custom_call.1} parent=5 // pred_region
        %s448 = ssub.s32 %s32, 1
      $region12: #{tpu_custom_call.1} parent=5 // pred_fallthru
        _
      %p449 = scmp.lt.s32.totalorder %s32, 4
      // Predicated region
      $region13: #{tpu_custom_call.1} parent=5 // pred_check
        %p450 = pneg %p449
      $region14: #{tpu_custom_call.1} parent=5 // pred_check_branch
        %452 = sbr.rel (%p450) target = $region16
      $region15: #{tpu_custom_call.1} parent=5 // pred_region
        // Predicated region
        $region17: #{tpu_custom_call.1} parent=15 // pred_check
          %p453 = pneg %p64
        $region18: #{tpu_custom_call.1} parent=15 // pred_check_branch
          %455 = sbr.rel (%p453) target = $region20
        $region19: #{tpu_custom_call.1} parent=15 // pred_region
          %s456 = sand.u32 %s54, 1
          %s457 = scalar_lea.sflag [#allocation5], %s456
          %s458 = sand.u32 %s54, 1
          %s459 = smul.addr %s458, 4
          %s460 = scalar_lea.vmem [#allocation4], %s459
          %462 = vsyncadd %s457, 0
          %s463 = smul.addr %s39, 4
          %s464 = scalar_lea.hbm %s0, %s463
          %s466 = sshll.u32 %s464, 4
          %s467 = int_to_ptr.hbm [resolvable:$true] %s466
          %s468 = sshll.u32 %s460, 4
          %s469 = int_to_ptr.vmem [resolvable:$true] %s468
          %471 = dma.hbm_to_vmem [thread:$0]  %s467, 64, %s469, %s457
        $region20: #{tpu_custom_call.1} parent=15 // pred_fallthru
          _
        // Predicated region
        $region21: #{tpu_custom_call.1} parent=15 // pred_check
          %p472 = pneg %p90
        $region22: #{tpu_custom_call.1} parent=15 // pred_check_branch
          %474 = sbr.rel (%p472) target = $region24
        $region23: #{tpu_custom_call.1} parent=15 // pred_region
          %s475 = sand.u32 %s32, 1
          %s476 = scalar_lea.sflag [#allocation8], %s475
          %s477 = sand.u32 %s80, 1
          %s478 = scalar_lea.vmem [#allocation7], %s477
          %480 = vsyncadd %s476, 0
          %s481 = scalar_lea.hbm %s1, %s39
          %s483 = sshll.u32 %s481, 4
          %s484 = int_to_ptr.hbm [resolvable:$true] %s483
          %s485 = sshll.u32 %s478, 4
          %s486 = int_to_ptr.vmem [resolvable:$true] %s485
          %488 = dma.hbm_to_vmem [thread:$0]  %s484, 16, %s486, %s476
        $region24: #{tpu_custom_call.1} parent=15 // pred_fallthru
          _
        // Predicated region
        $region25: #{tpu_custom_call.1} parent=15 // pred_check
          %p489 = pneg %p116
        $region26: #{tpu_custom_call.1} parent=15 // pred_check_branch
          %491 = sbr.rel (%p489) target = $region28
        $region27: #{tpu_custom_call.1} parent=15 // pred_region
          %p492 = scmp.lt.s32.totalorder %s40, 1
          %s493 = scalar_select %p492, %s40, 1
          %s494 = smul.addr %s493, 4
          %s495 = smul.addr %s494, 4
          %s496 = scalar_lea.vmem %s2, %s495
        $region28: #{tpu_custom_call.1} parent=15 // pred_fallthru
          _
        // Predicated region
        $region29: #{tpu_custom_call.1} parent=15 // pred_check
          %p497 = pneg %p142
        $region30: #{tpu_custom_call.1} parent=15 // pred_check_branch
          %499 = sbr.rel (%p497) target = $region32
        $region31: #{tpu_custom_call.1} parent=15 // pred_region
          %s500 = sand.u32 %s32, 1
          %s501 = scalar_lea.sflag [#allocation8], %s500
          %s502 = sand.u32 %s132, 1
          %s503 = scalar_lea.vmem [#allocation9], %s502
          %505 = vsyncadd %s501, 0
          %s506 = scalar_lea.hbm %s3, %s40
          %s508 = sshll.u32 %s506, 4
          %s509 = int_to_ptr.hbm [resolvable:$true] %s508
          %s510 = sshll.u32 %s503, 4
          %s511 = int_to_ptr.vmem [resolvable:$true] %s510
          %513 = dma.hbm_to_vmem [thread:$0]  %s509, 16, %s511, %s501
        $region32: #{tpu_custom_call.1} parent=15 // pred_fallthru
          _
        // Predicated region
        $region33: #{tpu_custom_call.1} parent=15 // pred_check
          %p514 = pneg %p168
        $region34: #{tpu_custom_call.1} parent=15 // pred_check_branch
          %516 = sbr.rel (%p514) target = $region36
        $region35: #{tpu_custom_call.1} parent=15 // pred_region
          %p517 = scmp.lt.s32.totalorder %s40, 1
          %s518 = scalar_select %p517, %s40, 1
          %s519 = smul.addr %s518, 4
          %s520 = smul.addr %s519, 4
          %s521 = scalar_lea.vmem %s4, %s520
        $region36: #{tpu_custom_call.1} parent=15 // pred_fallthru
          _
        // Predicated region
        $region37: #{tpu_custom_call.1} parent=15 // pred_check
          %p522 = pneg %p194
        $region38: #{tpu_custom_call.1} parent=15 // pred_check_branch
          %524 = sbr.rel (%p522) target = $region40
        $region39: #{tpu_custom_call.1} parent=15 // pred_region
          %p525 = scmp.lt.s32.totalorder %s40, 1
          %s526 = scalar_select %p525, %s40, 1
          %s527 = scalar_lea.vmem %s5, %s526
        $region40: #{tpu_custom_call.1} parent=15 // pred_fallthru
          _
        // Predicated region
        $region41: #{tpu_custom_call.1} parent=15 // pred_check
          %p528 = pneg %p220
        $region42: #{tpu_custom_call.1} parent=15 // pred_check_branch
          %530 = sbr.rel (%p528) target = $region44
        $region43: #{tpu_custom_call.1} parent=15 // pred_region
          %p531 = scmp.lt.s32.totalorder %s40, 1
          %s532 = scalar_select %p531, %s40, 1
          %s533 = scalar_lea.vmem %s6, %s532
        $region44: #{tpu_custom_call.1} parent=15 // pred_fallthru
          _
        // Predicated region
        $region45: #{tpu_custom_call.1} parent=15 // pred_check
          %p534 = pneg %p246
        $region46: #{tpu_custom_call.1} parent=15 // pred_check_branch
          %536 = sbr.rel (%p534) target = $region48
        $region47: #{tpu_custom_call.1} parent=15 // pred_region
          %s537 = sand.u32 %s32, 1
          %s538 = scalar_lea.sflag [#allocation11], %s537
          %s539 = sand.u32 %s236, 1
          %s540 = scalar_lea.vmem [#allocation10], %s539
          %542 = vsyncadd %s538, 0
          %s543 = scalar_lea.hbm %s7, %s40
          %s545 = sshll.u32 %s543, 4
          %s546 = int_to_ptr.hbm [resolvable:$true] %s545
          %s547 = sshll.u32 %s540, 4
          %s548 = int_to_ptr.vmem [resolvable:$true] %s547
          %550 = dma.hbm_to_vmem [thread:$0]  %s546, 16, %s548, %s538
        $region48: #{tpu_custom_call.1} parent=15 // pred_fallthru
          _
        // Predicated region
        $region49: #{tpu_custom_call.1} parent=15 // pred_check
          %p551 = pneg %p272
        $region50: #{tpu_custom_call.1} parent=15 // pred_check_branch
          %553 = sbr.rel (%p551) target = $region52
        $region51: #{tpu_custom_call.1} parent=15 // pred_region
          %p554 = scmp.lt.s32.totalorder %s40, 1
          %s555 = scalar_select %p554, %s40, 1
          %s556 = smul.addr %s555, 4
          %s557 = smul.addr %s556, 4
          %s558 = scalar_lea.vmem %s8, %s557
        $region52: #{tpu_custom_call.1} parent=15 // pred_fallthru
          _
        // Predicated region
        $region53: #{tpu_custom_call.1} parent=15 // pred_check
          %p559 = pneg %p298
        $region54: #{tpu_custom_call.1} parent=15 // pred_check_branch
          %561 = sbr.rel (%p559) target = $region56
        $region55: #{tpu_custom_call.1} parent=15 // pred_region
          %p562 = scmp.lt.s32.totalorder %s40, 1
          %s563 = scalar_select %p562, %s40, 1
          %s564 = scalar_lea.vmem %s9, %s563
        $region56: #{tpu_custom_call.1} parent=15 // pred_fallthru
          _
        // Predicated region
        $region57: #{tpu_custom_call.1} parent=15 // pred_check
          %p565 = pneg %p324
        $region58: #{tpu_custom_call.1} parent=15 // pred_check_branch
          %567 = sbr.rel (%p565) target = $region60
        $region59: #{tpu_custom_call.1} parent=15 // pred_region
          %p568 = scmp.lt.s32.totalorder %s40, 1
          %s569 = scalar_select %p568, %s40, 1
          %s570 = smul.addr %s569, 8
          %s571 = smul.addr %s570, 4
          %s572 = scalar_lea.vmem %s10, %s571
        $region60: #{tpu_custom_call.1} parent=15 // pred_fallthru
          _
        // Predicated region
        $region61: #{tpu_custom_call.1} parent=15 // pred_check
          %p573 = pneg %p350
        $region62: #{tpu_custom_call.1} parent=15 // pred_check_branch
          %575 = sbr.rel (%p573) target = $region64
        $region63: #{tpu_custom_call.1} parent=15 // pred_region
          %p576 = scmp.lt.s32.totalorder %s40, 1
          %s577 = scalar_select %p576, %s40, 1
          %s578 = scalar_lea.vmem %s11, %s577
        $region64: #{tpu_custom_call.1} parent=15 // pred_fallthru
          _
        // Predicated region
        $region65: #{tpu_custom_call.1} parent=15 // pred_check
          %p579 = pneg %p376
        $region66: #{tpu_custom_call.1} parent=15 // pred_check_branch
          %581 = sbr.rel (%p579) target = $region68
        $region67: #{tpu_custom_call.1} parent=15 // pred_region
          %p582 = scmp.lt.s32.totalorder %s40, 1
          %s583 = scalar_select %p582, %s40, 1
          %s584 = scalar_lea.vmem %s12, %s583
        $region68: #{tpu_custom_call.1} parent=15 // pred_fallthru
          _
        // Predicated region
        $region69: #{tpu_custom_call.1} parent=15 // pred_check
          %p585 = pneg %p402
        $region70: #{tpu_custom_call.1} parent=15 // pred_check_branch
          %587 = sbr.rel (%p585) target = $region72
        $region71: #{tpu_custom_call.1} parent=15 // pred_region
          %s588 = sand.u32 %s32, 1
          %s589 = scalar_lea.sflag [#allocation11], %s588
          %s590 = sand.u32 %s392, 1
          %s591 = scalar_lea.vmem [#allocation12], %s590
          %593 = vsyncadd %s589, 0
          %s594 = scalar_lea.hbm %s13, %s40
          %s596 = sshll.u32 %s594, 4
          %s597 = int_to_ptr.hbm [resolvable:$true] %s596
          %s598 = sshll.u32 %s591, 4
          %s599 = int_to_ptr.vmem [resolvable:$true] %s598
          %601 = dma.hbm_to_vmem [thread:$0]  %s597, 16, %s599, %s589
        $region72: #{tpu_custom_call.1} parent=15 // pred_fallthru
          _
      $region16: #{tpu_custom_call.1} parent=5 // pred_fallthru
        _
      %p602 = scmp.le.s32.totalorder 1, %s32
      %p603 = scmp.lt.s32.totalorder %s32, 5
      %p604 = pnand %p602, %p603
      %p605 = pneg %p604
      // Predicated region
      $region73: #{tpu_custom_call.1} parent=5 // pred_check
        _
      $region74: #{tpu_custom_call.1} parent=5 // pred_check_branch
        %607 = sbr.rel (%p604) target = $region76
      $region75: #{tpu_custom_call.1} parent=5 // pred_region
        %s608 = ssub.s32 %s32, 1
        %s609 = sand.u32 %s57, 1
        %s610 = scalar_lea.sflag [#allocation5], %s609
        %s611 = sand.u32 %s57, 1
        %s612 = smul.addr %s611, 4
        %s613 = scalar_lea.vmem [#allocation4], %s612
        // Predicated region
        $region77: #{tpu_custom_call.1} parent=75 // pred_check
          %p614 = pneg %p70
        $region78: #{tpu_custom_call.1} parent=75 // pred_check_branch
          %616 = sbr.rel (%p614) target = $region80
        $region79: #{tpu_custom_call.1} parent=75 // pred_region
          %618 = dma.done %s610, 64
        $region80: #{tpu_custom_call.1} parent=75 // pred_fallthru
          _
        %s619 = sand.u32 %s37, 1
        %s620 = scalar_lea.sflag [#allocation8], %s619
        %s621 = sand.u32 %s83, 1
        %s622 = scalar_lea.vmem [#allocation7], %s621
        // Predicated region
        $region81: #{tpu_custom_call.1} parent=75 // pred_check
          %p623 = pneg %p96
        $region82: #{tpu_custom_call.1} parent=75 // pred_check_branch
          %625 = sbr.rel (%p623) target = $region84
        $region83: #{tpu_custom_call.1} parent=75 // pred_region
          %627 = dma.done %s620, 16
        $region84: #{tpu_custom_call.1} parent=75 // pred_fallthru
          _
        %s628 = sand.u32 %s37, 1
        %s629 = scalar_lea.sflag [#allocation8], %s628
        %s630 = sand.u32 %s135, 1
        %s631 = scalar_lea.vmem [#allocation9], %s630
        // Predicated region
        $region85: #{tpu_custom_call.1} parent=75 // pred_check
          %p632 = pneg %p148
        $region86: #{tpu_custom_call.1} parent=75 // pred_check_branch
          %634 = sbr.rel (%p632) target = $region88
        $region87: #{tpu_custom_call.1} parent=75 // pred_region
          %636 = dma.done %s629, 16
        $region88: #{tpu_custom_call.1} parent=75 // pred_fallthru
          _
        %s637 = sand.u32 %s37, 1
        %s638 = scalar_lea.sflag [#allocation11], %s637
        %s639 = sand.u32 %s239, 1
        %s640 = scalar_lea.vmem [#allocation10], %s639
        // Predicated region
        $region89: #{tpu_custom_call.1} parent=75 // pred_check
          %p641 = pneg %p252
        $region90: #{tpu_custom_call.1} parent=75 // pred_check_branch
          %643 = sbr.rel (%p641) target = $region92
        $region91: #{tpu_custom_call.1} parent=75 // pred_region
          %645 = dma.done %s638, 16
        $region92: #{tpu_custom_call.1} parent=75 // pred_fallthru
          _
        %s646 = sand.u32 %s37, 1
        %s647 = scalar_lea.sflag [#allocation11], %s646
        %s648 = sand.u32 %s395, 1
        %s649 = scalar_lea.vmem [#allocation12], %s648
        // Predicated region
        $region93: #{tpu_custom_call.1} parent=75 // pred_check
          %p650 = pneg %p408
        $region94: #{tpu_custom_call.1} parent=75 // pred_check_branch
          %652 = sbr.rel (%p650) target = $region96
        $region95: #{tpu_custom_call.1} parent=75 // pred_region
          %654 = dma.done %s647, 16
        $region96: #{tpu_custom_call.1} parent=75 // pred_fallthru
          _
        %s655 = sand.u32 %s57, 1
        %s656 = scalar_lea.sflag [#allocation5], %s655
        %s657 = sand.u32 %s57, 1
        %s658 = smul.addr %s657, 4
        %s659 = scalar_lea.vmem [#allocation4], %s658
        %p660 = pneg %p70
        %p661 = pneg %p67
        %s662 = sand.u32 %s37, 1
        %s663 = scalar_lea.sflag [#allocation8], %s662
        %s664 = sand.u32 %s83, 1
        %s665 = scalar_lea.vmem [#allocation7], %s664
        %p666 = pneg %p96
        %p667 = pneg %p93
        %p668 = scmp.lt.s32.totalorder %s42, 1
        %s669 = scalar_select %p668, %s42, 1
        %s670 = smul.addr %s669, 4
        %s671 = smul.addr %s670, 4
        %s672 = scalar_lea.vmem %s2, %s671
        %p673 = pneg %p122
        %p674 = pneg %p119
        %s675 = sand.u32 %s37, 1
        %s676 = scalar_lea.sflag [#allocation8], %s675
        %s677 = sand.u32 %s135, 1
        %s678 = scalar_lea.vmem [#allocation9], %s677
        %p679 = pneg %p148
        %p680 = pneg %p145
        %p681 = scmp.lt.s32.totalorder %s42, 1
        %s682 = scalar_select %p681, %s42, 1
        %s683 = smul.addr %s682, 4
        %s684 = smul.addr %s683, 4
        %s685 = scalar_lea.vmem %s4, %s684
        %p686 = pneg %p174
        %p687 = pneg %p171
        %p688 = scmp.lt.s32.totalorder %s42, 1
        %s689 = scalar_select %p688, %s42, 1
        %s690 = scalar_lea.vmem %s5, %s689
        %p691 = pneg %p200
        %p692 = pneg %p197
        %p693 = scmp.lt.s32.totalorder %s42, 1
        %s694 = scalar_select %p693, %s42, 1
        %s695 = scalar_lea.vmem %s6, %s694
        %p696 = pneg %p226
        %p697 = pneg %p223
        %s698 = sand.u32 %s37, 1
        %s699 = scalar_lea.sflag [#allocation11], %s698
        %s700 = sand.u32 %s239, 1
        %s701 = scalar_lea.vmem [#allocation10], %s700
        %p702 = pneg %p252
        %p703 = pneg %p249
        %p704 = scmp.lt.s32.totalorder %s42, 1
        %s705 = scalar_select %p704, %s42, 1
        %s706 = smul.addr %s705, 4
        %s707 = smul.addr %s706, 4
        %s708 = scalar_lea.vmem %s8, %s707
        %p709 = pneg %p278
        %p710 = pneg %p275
        %p711 = scmp.lt.s32.totalorder %s42, 1
        %s712 = scalar_select %p711, %s42, 1
        %s713 = scalar_lea.vmem %s9, %s712
        %p714 = pneg %p304
        %p715 = pneg %p301
        %p716 = scmp.lt.s32.totalorder %s42, 1
        %s717 = scalar_select %p716, %s42, 1
        %s718 = smul.addr %s717, 8
        %s719 = smul.addr %s718, 4
        %s720 = scalar_lea.vmem %s10, %s719
        %p721 = pneg %p330
        %p722 = pneg %p327
        %p723 = scmp.lt.s32.totalorder %s42, 1
        %s724 = scalar_select %p723, %s42, 1
        %s725 = scalar_lea.vmem %s11, %s724
        %p726 = pneg %p356
        %p727 = pneg %p353
        %p728 = scmp.lt.s32.totalorder %s42, 1
        %s729 = scalar_select %p728, %s42, 1
        %s730 = scalar_lea.vmem %s12, %s729
        %p731 = pneg %p382
        %p732 = pneg %p379
        %s733 = sand.u32 %s37, 1
        %s734 = scalar_lea.sflag [#allocation11], %s733
        %s735 = sand.u32 %s395, 1
        %s736 = scalar_lea.vmem [#allocation12], %s735
        %p737 = pneg %p408
        %p738 = pneg %p405
        %p739 = pneg %p434
        %p740 = pneg %p431
        %s741 = sand.u32 %s421, 1
        %s742 = scalar_lea.sflag [#allocation6], %s741
        %s743 = sand.u32 %s421, 1
        %s744 = smul.addr %s743, 8
        %s745 = scalar_lea.vmem [#allocation13], %s744
        %p746 = scmp.lt.s32.totalorder %s42, 1
        %s747 = scalar_select %p746, %s42, 1
        %s748 = smul.addr %s747, 4
        %s749 = smul.addr %s748, 4
        %s750 = scalar_lea.vmem %s2, %s749
        %p751 = scmp.lt.s32.totalorder %s42, 1
        %s752 = scalar_select %p751, %s42, 1
        %s753 = smul.addr %s752, 4
        %s754 = smul.addr %s753, 4
        %s755 = scalar_lea.vmem %s4, %s754
        %p756 = scmp.lt.s32.totalorder %s42, 1
        %s757 = scalar_select %p756, %s42, 1
        %s758 = scalar_lea.vmem %s5, %s757
        %p759 = scmp.lt.s32.totalorder %s42, 1
        %s760 = scalar_select %p759, %s42, 1
        %s761 = scalar_lea.vmem %s6, %s760
        %p762 = scmp.lt.s32.totalorder %s42, 1
        %s763 = scalar_select %p762, %s42, 1
        %s764 = smul.addr %s763, 4
        %s765 = smul.addr %s764, 4
        %s766 = scalar_lea.vmem %s8, %s765
        %p767 = scmp.lt.s32.totalorder %s42, 1
        %s768 = scalar_select %p767, %s42, 1
        %s769 = scalar_lea.vmem %s9, %s768
        %p770 = scmp.lt.s32.totalorder %s42, 1
        %s771 = scalar_select %p770, %s42, 1
        %s772 = smul.addr %s771, 8
        %s773 = smul.addr %s772, 4
        %s774 = scalar_lea.vmem %s10, %s773
        %p775 = scmp.lt.s32.totalorder %s42, 1
        %s776 = scalar_select %p775, %s42, 1
        %s777 = scalar_lea.vmem %s11, %s776
        %p778 = scmp.lt.s32.totalorder %s42, 1
        %s779 = scalar_select %p778, %s42, 1
        %s780 = scalar_lea.vmem %s12, %s779
        %p782 = scmp.eq.s32.totalorder %s42, 0
        // Predicated region
        $region97: #{tpu_custom_call.1} parent=75 // pred_check
          %p783 = pneg %p782
        $region98: #{tpu_custom_call.1} parent=75 // pred_check_branch
          %785 = sbr.rel (%p783) target = $region100
        $region99: #{tpu_custom_call.1} parent=75 // pred_region
          %v786 = vld [vmem:[%s613] sm:$0xf]
          %v787 = vunpack.c.l.bf16 %v786
          %vm788 = vcmask 261120
          %789 = vst.msk [vmem:[#allocation2] sm:$0xff] %vm788, %v787
        $region100: #{tpu_custom_call.1} parent=75 // pred_fallthru
          _
        %v790 = vld [vmem:[#allocation2] sm:$0xff]
        %v791 = vpack.c.bf16 %v790, %v790
        %v792 = vld [vmem:[%s750] sm:$0xf]
        %v793 = vld [vmem:[%s750 + $0x4] sm:$0xf]
        %v794 = vld [vmem:[%s750 + $0x8] sm:$0xf]
        %v795 = vld [vmem:[%s750 + $0xc] sm:$0xf]
        %v796 = vld [vmem:[%s631] sm:$0x1]
        %v798 = vperm.slane %v796, 0
        %v804 = vunpack.c.l.b16 %v792
        %v805 = vunpack.c.l.b16 %v793
        %v806 = vunpack.c.l.b16 %v794
        %v807 = vunpack.c.l.b16 %v795
        %v808 = vpack.c.b16 %v805, %v804
        %v809 = vpack.c.b16 %v807, %v806
        %vm812 = vcmask 261120
        %v814 = vsel %vm812, %v791, 0
        %816 = vmatpush.bf16.msra.mxu0 0
        %817 = vmatpush.bf16.msra.mxu0 0
        %818 = vmatpush.bf16.msra.mxu0 0
        %819 = vmatpush.bf16.msra.mxu0 0
        %820 = vmatpush.bf16.msra.mxu0 0
        %821 = vmatpush.bf16.msra.mxu0 0
        %822 = vmatpush.bf16.msra.mxu0 %v809
        %823 = vmatpush.bf16.msra.mxu0 %v808
        %824 = vmatmul.bf16.gmra.mxu0 %v814
        %v825 = vpop.f32.mrf.mxu0
        %v826 = vadd.f32 %v798, %v825
        %v827 = vpop.f32.mrf.mxu0
        %828 = vdwg.mxu0
        %v829 = vpack.c.bf16 %v826, %v826
        %vm830 = vcmask 781312
        %831 = vst.msk [vmem:[#allocation3] sm:$0xf] %vm830, %v829
        %v832 = vld [vmem:[%s622] sm:$0x1]
        %v833 = vld [vmem:[#allocation3] sm:$0xf]
        %v835 = vperm.slane %v832, 0
        %v838 = vunpack.c.l.b16 %v833
        %v839 = vpack.c.b16 %v838, %v838
        %840 = vrot.lane.b32.xlu0 %v839, 96
        %v841 = vpop.permute.xlu0 %840
        %vm842 = vcmask 130048
        %v844 = vsel %vm842, %v833, 0
        %v847 = vsel %vm842, %v841, 0
        %849 = vmatpush.bf16.xpose.msra.mxu0 0
        %850 = vmatpush.bf16.xpose.msra.mxu0 0
        %851 = vmatpush.bf16.xpose.msra.mxu0 0
        %852 = vmatpush.bf16.xpose.msra.mxu0 0
        %853 = vmatpush.bf16.xpose.msra.mxu0 0
        %854 = vmatpush.bf16.xpose.msra.mxu0 0
        %855 = vmatpush.bf16.xpose.msra.mxu0 0
        %856 = vmatpush.bf16.xpose.msra.mxu0 %v847
        %857 = vmatmul.bf16.gmra.mxu0 %v844
        %v858 = vpop.f32.mrf.mxu0
        %v859 = vadd.f32 %v835, %v858
        %v860 = vpop.f32.mrf.mxu0
        %861 = vdwg.mxu0
        %vm862 = vcmask 64512
        %v863 = vsel %vm862, %v859, -inf
        %864 = vmax.xlane.f32.xlu0 %v863
        %v865 = vpop.xlane.xlu0 %864
        %v866 = vsub.f32 %v859, %v865
        %v867 = vmul.f32 %v866, 1.442695
        %v868 = vpow.pop %v867
        %v869 = vsel %vm862, %v868, 0.0
        %870 = vadd.xlane.f32.xlu0 %v869
        %v871 = vpop.xlane.xlu0 %870
        %v872 = vrcp.pop %v871
        %v873 = vmul.f32 %v868, %v872
        %v874 = vpack.c.bf16 %v873, %v873
        %875 = vrot.lane.b32.xlu0 %v839, 64
        %v876 = vpop.permute.xlu0 %875
        %v878 = vsel %vm862, %v874, 0
        %vm880 = vcmask 1043456
        %v882 = vsel %vm880, %v876, 0
        %884 = vmatpush.bf16.msra.mxu0 0
        %885 = vmatpush.bf16.msra.mxu0 0
        %886 = vmatpush.bf16.msra.mxu0 0
        %887 = vmatpush.bf16.msra.mxu0 0
        %888 = vmatpush.bf16.msra.mxu0 0
        %889 = vmatpush.bf16.msra.mxu0 0
        %890 = vmatpush.bf16.msra.mxu0 0
        %891 = vmatpush.bf16.msra.mxu0 %v882
        %892 = vmatmul.bf16.gmra.mxu0 %v878
        %v893 = vpop.f32.mrf.mxu0
        %v894 = vadd.f32 0.0, %v893
        %v895 = vpop.f32.mrf.mxu0
        %896 = vdwg.mxu0
        %v897 = vpack.c.bf16 %v894, %v894
        %v898 = vld [vmem:[#allocation3] sm:$0xf]
        %v900 = vunpack.c.l.b16 %v898
        %v901 = vpack.c.b16 %v900, %v900
        %902 = vrot.lane.b32.xlu0 %v901, 112
        %v903 = vpop.permute.xlu0 %902
        %904 = vrot.lane.b32.xlu0 %v901, 80
        %v905 = vpop.permute.xlu0 %904
        %v907 = vsel %vm842, %v903, 0
        %v910 = vsel %vm842, %v905, 0
        %912 = vmatpush.bf16.xpose.msra.mxu0 0
        %913 = vmatpush.bf16.xpose.msra.mxu0 0
        %914 = vmatpush.bf16.xpose.msra.mxu0 0
        %915 = vmatpush.bf16.xpose.msra.mxu0 0
        %916 = vmatpush.bf16.xpose.msra.mxu0 0
        %917 = vmatpush.bf16.xpose.msra.mxu0 0
        %918 = vmatpush.bf16.xpose.msra.mxu0 0
        %919 = vmatpush.bf16.xpose.msra.mxu0 %v910
        %920 = vmatmul.bf16.gmra.mxu0 %v907
        %v921 = vpop.f32.mrf.mxu0
        %v922 = vadd.f32 %v835, %v921
        %v923 = vpop.f32.mrf.mxu0
        %924 = vdwg.mxu0
        %v925 = vsel %vm862, %v922, -inf
        %926 = vmax.xlane.f32.xlu0 %v925
        %v927 = vpop.xlane.xlu0 %926
        %v928 = vsub.f32 %v922, %v927
        %v929 = vmul.f32 %v928, 1.442695
        %v930 = vpow.pop %v929
        %v931 = vsel %vm862, %v930, 0.0
        %932 = vadd.xlane.f32.xlu0 %v931
        %v933 = vpop.xlane.xlu0 %932
        %v934 = vrcp.pop %v933
        %v935 = vmul.f32 %v930, %v934
        %v936 = vpack.c.bf16 %v935, %v935
        %937 = vrot.lane.b32.xlu0 %v901, 48
        %v938 = vpop.permute.xlu0 %937
        %v940 = vsel %vm862, %v936, 0
        %v943 = vsel %vm880, %v938, 0
        %945 = vmatpush.bf16.msra.mxu0 0
        %946 = vmatpush.bf16.msra.mxu0 0
        %947 = vmatpush.bf16.msra.mxu0 0
        %948 = vmatpush.bf16.msra.mxu0 0
        %949 = vmatpush.bf16.msra.mxu0 0
        %950 = vmatpush.bf16.msra.mxu0 0
        %951 = vmatpush.bf16.msra.mxu0 0
        %952 = vmatpush.bf16.msra.mxu0 %v943
        %953 = vmatmul.bf16.gmra.mxu0 %v940
        %v954 = vpop.f32.mrf.mxu0
        %v955 = vadd.f32 0.0, %v954
        %v956 = vpop.f32.mrf.mxu0
        %957 = vdwg.mxu0
        %v958 = vpack.c.bf16 %v955, %v955
        %v960 = vunpack.c.l.b16 %v958
        %v961 = vpack.c.b16 %v960, %v960
        %962 = vrot.lane.b32.xlu0 %v961, 16
        %v963 = vpop.permute.xlu0 %962
        %v966 = vsel %vm842, %v897, %v963
        %v967 = vld [vmem:[%s755] sm:$0xf]
        %v968 = vld [vmem:[%s755 + $0x4] sm:$0xf]
        %v969 = vld [vmem:[%s755 + $0x8] sm:$0xf]
        %v970 = vld [vmem:[%s755 + $0xc] sm:$0xf]
        %v971 = vld [vmem:[%s758] sm:$0x1]
        %v973 = vperm.slane %v971, 0
        %v979 = vunpack.c.l.b16 %v967
        %v980 = vunpack.c.l.b16 %v968
        %v981 = vunpack.c.l.b16 %v969
        %v982 = vunpack.c.l.b16 %v970
        %v983 = vpack.c.b16 %v980, %v979
        %v984 = vpack.c.b16 %v982, %v981
        %v987 = vsel %vm812, %v966, 0
        %989 = vmatpush.bf16.msra.mxu0 0
        %990 = vmatpush.bf16.msra.mxu0 0
        %991 = vmatpush.bf16.msra.mxu0 0
        %992 = vmatpush.bf16.msra.mxu0 0
        %993 = vmatpush.bf16.msra.mxu0 0
        %994 = vmatpush.bf16.msra.mxu0 0
        %995 = vmatpush.bf16.msra.mxu0 %v984
        %996 = vmatpush.bf16.msra.mxu0 %v983
        %997 = vmatmul.bf16.gmra.mxu0 %v987
        %v998 = vpop.f32.mrf.mxu0
        %v999 = vadd.f32 %v973, %v998
        %v1000 = vpop.f32.mrf.mxu0
        %1001 = vdwg.mxu0
        %v1002 = vadd.f32 %v999, %v790
        %v1003 = vsel %vm812, %v1002, 0.0
        %1004 = vadd.xlane.f32.xlu0 %v1003
        %v1005 = vpop.xlane.xlu0 %1004
        %v1006 = vmul.f32 %v1005, 0.03125
        %v1007 = vmul.f32 %v1002, %v1002
        %v1008 = vsel %vm812, %v1007, 0.0
        %1009 = vadd.xlane.f32.xlu0 %v1008
        %v1010 = vpop.xlane.xlu0 %1009
        %v1011 = vmul.f32 %v1010, 0.03125
        %v1012 = vmul.f32 %v1006, %v1006
        %v1013 = vsub.f32 %v1011, %v1012
        %v1014 = vmax.f32 %v1013, 0.0
        %v1015 = vsub.f32 %v1002, %v1006
        %v1016 = vadd.f32 %v1014, 1e-05
        %v1017 = vrsqrt.pop %v1016
        %v1018 = vmul.f32 %v1017, %v1016
        %v1019 = vmul.f32 %v1018, %v1017
        %v1020 = vmul.f32 0.5, %v1019
        %v1021 = vsub.f32 1.5, %v1020
        %v1022 = vmul.f32 %v1017, %v1021
        %vm1023 = vweird.f32 %v1016
        %vm1024 = vweird.f32 %v1017
        %vm1025 = vmor %vm1023, %vm1024
        %v1026 = vsel %vm1025, %v1017, %v1022
        %v1027 = vmul.f32 %v1015, %v1026
        %v1028 = vld [vmem:[%s761] sm:$0x1]
        %v1030 = vperm.slane %v1028, 0
        %v1032 = vmul.f32 %v1027, %v1030
        %v1033 = vld [vmem:[%s640] sm:$0x1]
        %v1035 = vperm.slane %v1033, 0
        %v1037 = vadd.f32 %v1032, %v1035
        %1038 = vst.msk [vmem:[#allocation2] sm:$0xff] %vm812, %v1037
        %v1039 = vld [vmem:[%s769] sm:$0x1]
        %v1040 = vld [vmem:[%s777] sm:$0x1]
        %v1041 = vld [vmem:[%s780] sm:$0x1]
        %v1042 = vld [vmem:[%s649] sm:$0x1]
        %v1043 = vld [vmem:[#allocation2] sm:$0xff]
        %v1044 = vpack.c.bf16 %v1043, %v1043
        %v1045 = vld [vmem:[%s766] sm:$0xf]
        %v1046 = vld [vmem:[%s766 + $0x4] sm:$0xf]
        %v1047 = vld [vmem:[%s766 + $0x8] sm:$0xf]
        %v1048 = vld [vmem:[%s766 + $0xc] sm:$0xf]
        %v1050 = vperm.slane %v1039, 0
        %v1056 = vunpack.c.l.b16 %v1045
        %v1057 = vunpack.c.l.b16 %v1046
        %v1058 = vunpack.c.l.b16 %v1047
        %v1059 = vunpack.c.l.b16 %v1048
        %v1060 = vpack.c.b16 %v1057, %v1056
        %v1061 = vpack.c.b16 %v1059, %v1058
        %v1065 = vsel %vm812, %v1044, 0
        %1067 = vmatpush.bf16.msra.mxu0 0
        %1068 = vmatpush.bf16.msra.mxu0 0
        %1069 = vmatpush.bf16.msra.mxu0 0
        %1070 = vmatpush.bf16.msra.mxu0 0
        %1071 = vmatpush.bf16.msra.mxu0 0
        %1072 = vmatpush.bf16.msra.mxu0 0
        %1073 = vmatpush.bf16.msra.mxu0 %v1061
        %1074 = vmatpush.bf16.msra.mxu0 %v1060
        %1075 = vmatmul.bf16.gmra.mxu0 %v1065
        %v1076 = vpop.f32.mrf.mxu0
        %v1077 = vadd.f32 %v1050, %v1076
        %v1078 = vpop.f32.mrf.mxu0
        %1079 = vdwg.mxu0
        %v1080 = vmax.f32 %v1077, 0.0
        %v1081 = vpack.c.bf16 %v1080, %v1080
        %v1082 = vld [vmem:[%s774] sm:$0xf]
        %v1083 = vld [vmem:[%s774 + $0x4] sm:$0xf]
        %v1084 = vld [vmem:[%s774 + $0x8] sm:$0xf]
        %v1085 = vld [vmem:[%s774 + $0xc] sm:$0xf]
        %v1086 = vld [vmem:[%s774 + $0x10] sm:$0xf]
        %v1087 = vld [vmem:[%s774 + $0x14] sm:$0xf]
        %v1088 = vld [vmem:[%s774 + $0x18] sm:$0xf]
        %v1089 = vld [vmem:[%s774 + $0x1c] sm:$0xf]
        %v1091 = vperm.slane %v1040, 0
        %v1101 = vunpack.c.l.b16 %v1082
        %v1102 = vunpack.c.l.b16 %v1083
        %v1103 = vunpack.c.l.b16 %v1084
        %v1104 = vunpack.c.l.b16 %v1085
        %v1105 = vunpack.c.l.b16 %v1086
        %v1106 = vunpack.c.l.b16 %v1087
        %v1107 = vunpack.c.l.b16 %v1088
        %v1108 = vunpack.c.l.b16 %v1089
        %v1109 = vpack.c.b16 %v1102, %v1101
        %v1110 = vpack.c.b16 %v1104, %v1103
        %v1111 = vpack.c.b16 %v1106, %v1105
        %v1112 = vpack.c.b16 %v1108, %v1107
        %vm1117 = vcmask 523264
        %v1119 = vsel %vm1117, %v1081, 0
        %1121 = vmatpush.bf16.msra.mxu0 0
        %1122 = vmatpush.bf16.msra.mxu0 0
        %1123 = vmatpush.bf16.msra.mxu0 0
        %1124 = vmatpush.bf16.msra.mxu0 0
        %1125 = vmatpush.bf16.msra.mxu0 %v1112
        %1126 = vmatpush.bf16.msra.mxu0 %v1111
        %1127 = vmatpush.bf16.msra.mxu0 %v1110
        %1128 = vmatpush.bf16.msra.mxu0 %v1109
        %1129 = vmatmul.bf16.gmra.mxu0 %v1119
        %v1130 = vpop.f32.mrf.mxu0
        %v1131 = vadd.f32 %v1091, %v1130
        %v1132 = vpop.f32.mrf.mxu0
        %1133 = vdwg.mxu0
        %v1134 = vadd.f32 %v1131, %v1043
        %v1135 = vsel %vm812, %v1134, 0.0
        %1136 = vadd.xlane.f32.xlu0 %v1135
        %v1137 = vpop.xlane.xlu0 %1136
        %v1138 = vmul.f32 %v1137, 0.03125
        %v1139 = vmul.f32 %v1134, %v1134
        %v1140 = vsel %vm812, %v1139, 0.0
        %1141 = vadd.xlane.f32.xlu0 %v1140
        %v1142 = vpop.xlane.xlu0 %1141
        %v1143 = vmul.f32 %v1142, 0.03125
        %v1144 = vmul.f32 %v1138, %v1138
        %v1145 = vsub.f32 %v1143, %v1144
        %v1146 = vmax.f32 %v1145, 0.0
        %v1147 = vsub.f32 %v1134, %v1138
        %v1148 = vadd.f32 %v1146, 1e-05
        %v1149 = vrsqrt.pop %v1148
        %v1150 = vmul.f32 %v1149, %v1148
        %v1151 = vmul.f32 %v1150, %v1149
        %v1152 = vmul.f32 0.5, %v1151
        %v1153 = vsub.f32 1.5, %v1152
        %v1154 = vmul.f32 %v1149, %v1153
        %vm1155 = vweird.f32 %v1148
        %vm1156 = vweird.f32 %v1149
        %vm1157 = vmor %vm1155, %vm1156
        %v1158 = vsel %vm1157, %v1149, %v1154
        %v1159 = vmul.f32 %v1147, %v1158
        %v1161 = vperm.slane %v1041, 0
        %v1163 = vmul.f32 %v1159, %v1161
        %v1165 = vperm.slane %v1042, 0
        %v1167 = vadd.f32 %v1163, %v1165
        %1168 = vst.msk [vmem:[#allocation2] sm:$0xff] %vm812, %v1167
        %p1169 = scmp.eq.s32.totalorder %s42, 1
        // Predicated region
        $region101: #{tpu_custom_call.1} parent=75 // pred_check
          %p1170 = pneg %p1169
        $region102: #{tpu_custom_call.1} parent=75 // pred_check_branch
          %1172 = sbr.rel (%p1170) target = $region104
        $region103: #{tpu_custom_call.1} parent=75 // pred_region
          %v1173 = vld [vmem:[#allocation2] sm:$0xff]
          %1174 = vst.msk [vmem:[%s745] sm:$0xff] %vm812, %v1173
        $region104: #{tpu_custom_call.1} parent=75 // pred_fallthru
          _
        %s1175 = sand.u32 %s421, 1
        %s1176 = scalar_lea.sflag [#allocation6], %s1175
        %s1177 = sand.u32 %s421, 1
        %s1178 = smul.addr %s1177, 8
        %s1179 = scalar_lea.vmem [#allocation13], %s1178
        // Predicated region
        $region105: #{tpu_custom_call.1} parent=75 // pred_check
          %p1180 = pneg %p431
        $region106: #{tpu_custom_call.1} parent=75 // pred_check_branch
          %1182 = sbr.rel (%p1180) target = $region108
        $region107: #{tpu_custom_call.1} parent=75 // pred_region
          %1184 = vsyncadd %s1176, 0
          %s1185 = smul.addr %s41, 8
          %s1186 = scalar_lea.hbm %s14, %s1185
          %s1188 = sshll.u32 %s1179, 4
          %s1189 = int_to_ptr.vmem [resolvable:$true] %s1188
          %s1190 = sshll.u32 %s1186, 4
          %s1191 = int_to_ptr.hbm [resolvable:$true] %s1190
          %1193 = dma.vmem_to_hbm [thread:$0]  %s1189, 128, %s1191, %s1176
        $region108: #{tpu_custom_call.1} parent=75 // pred_fallthru
          _
      $region76: #{tpu_custom_call.1} parent=5 // pred_fallthru
        _
      %p1194 = scmp.le.s32.totalorder 2, %s32
      // Predicated region
      $region109: #{tpu_custom_call.1} parent=5 // pred_check
        %p1195 = pneg %p1194
      $region110: #{tpu_custom_call.1} parent=5 // pred_check_branch
        %1197 = sbr.rel (%p1195) target = $region112
      $region111: #{tpu_custom_call.1} parent=5 // pred_region
        %s1198 = ssub.s32 %s32, 2
        // Predicated region
        $region113: #{tpu_custom_call.1} parent=111 // pred_check
          %p1199 = pneg %p437
        $region114: #{tpu_custom_call.1} parent=111 // pred_check_branch
          %1201 = sbr.rel (%p1199) target = $region116
        $region115: #{tpu_custom_call.1} parent=111 // pred_region
          %s1202 = sand.u32 %s422, 1
          %s1203 = scalar_lea.sflag [#allocation6], %s1202
          %s1204 = sand.u32 %s422, 1
          %s1205 = smul.addr %s1204, 8
          %s1206 = scalar_lea.vmem [#allocation13], %s1205
          %1208 = dma.done %s1203, 128
        $region116: #{tpu_custom_call.1} parent=111 // pred_fallthru
          _
      $region112: #{tpu_custom_call.1} parent=5 // pred_fallthru
        _
    $region6: #{tpu_custom_call.1} parent=1 // loop_footer
      %s36 = sadd.s32 1, %s32
    $region7: #{tpu_custom_call.1} parent=1 // loop_footer_branch
      %31 = sbr.rel target = $region3
    $region8: #{tpu_custom_call.1} parent=1 // loop_exit
      _
    %1209 = vsyncpa [#allocation5], 1
    %s1210 = scalar_lea.sflag [#allocation5], 1
    %1211 = vsyncpa %s1210, 1
    %1212 = vsyncpa [#allocation8], 1
    %s1213 = scalar_lea.sflag [#allocation8], 1
    %1214 = vsyncpa %s1213, 1
    %1215 = vsyncpa [#allocation11], 1
    %s1216 = scalar_lea.sflag [#allocation11], 1
    %1217 = vsyncpa %s1216, 1
    %1218 = vsyncpa [#allocation6], 1
    %s1219 = scalar_lea.sflag [#allocation6], 1
    %1220 = vsyncpa %s1219, 1

</llo_original>
